<compile_context>
chip_gen: v5e
topology: v5e:2x2
jax: 0.10.0
libtpu: 0.0.40
codegen_flags: <defaults>
</compile_context>

<pallas_src>
from functools import partial

import jax
import jax.numpy as jnp
from jax.experimental import pallas as pl
from jax.experimental.pallas import tpu as pltpu

IGNORE_IDX = -100

# Small but lane/MXU-dense shapes consistent with the forward pass.
B, T = 4, 64
H = 128          # hidden size / contraction dim of both matmuls (full lane group)
VOCAB = 512      # lm_head vocab size (multiple of 256 -> dense MXU tiles on v6e/v7x)
N = B * T        # 256 tokens
CHUNK = 128      # token tile (analogous to the original chunk size 1024)
V_TILE = 256     # lm_head vocab tile streamed per grid step


# ---------------- fused backbone (dense+tanh) + vocab-tiled flash CE ----------------
def _fused_loss_kernel(tgt_ref, emb_ref, w1_ref, wh_ref, loss_ref,
                       h_scr, m_scr, l_scr, t_scr, *, n_tokens):
    i = pl.program_id(0)      # token-chunk axis ("parallel")
    j = pl.program_id(1)      # vocab-tile axis (reduction, last, "arbitrary")
    chunk = h_scr.shape[0]
    v_tile = wh_ref.shape[1]

    @pl.when(j == 0)
    def _init():
        # Backbone stand-in: hidden = tanh(emb @ W1).  bf16 MXU inputs, f32
        # accumulation, f32 tanh (EUP; v5e has no bf16 VPU/EUP path).  Computed once
        # per token chunk and cached in bf16 VMEM scratch for all vocab tiles.
        h = jnp.tanh(jnp.dot(emb_ref[...], w1_ref[...],
                             preferred_element_type=jnp.float32))        # (C, H) f32
        h_scr[...] = h.astype(jnp.bfloat16)
        m_scr[...] = jnp.full_like(m_scr, -jnp.inf)
        l_scr[...] = jnp.zeros_like(l_scr)
        t_scr[...] = jnp.zeros_like(t_scr)

    # lm_head vocab tile: (C, H) @ (H, VT) -> (C, VT).  Weight was pre-transposed
    # once outside the step, so no per-step XLU transpose is needed here.
    logits = jnp.dot(h_scr[...], wh_ref[...],
                     preferred_element_type=jnp.float32)                 # (C, VT) f32

    # Online logsumexp across vocab tiles (f32 running max + rescaled sum-exp).
    m_prev = m_scr[...]
    m_new = jnp.maximum(m_prev, jnp.max(logits, axis=-1, keepdims=True))
    alpha = jnp.exp(m_prev - m_new)
    p = jnp.exp(logits - m_new)
    l_scr[...] = alpha * l_scr[...] + jnp.sum(p, axis=-1, keepdims=True)
    m_scr[...] = m_new

    # Target logit: exactly one vocab tile holds each row's target column.
    # (tgt block is (C, 1) int32; padded lanes cost ~C*512 B of VMEM — negligible vs
    #  the weight tiles.  At real scale pass targets via scalar prefetch instead.)
    tgt = tgt_ref[...]                                                   # (C, 1) int32
    vocab_ids = j * v_tile + jax.lax.broadcasted_iota(jnp.int32, logits.shape, 1)
    t_scr[...] += jnp.sum(jnp.where(vocab_ids == tgt, logits, 0.0),
                          axis=-1, keepdims=True)

    @pl.when(j == pl.num_programs(1) - 1)
    def _finalize():
        per_tok = m_scr[...] + jnp.log(l_scr[...]) - t_scr[...]          # (C, 1) f32
        # Select-based masking (ignore-index + tail-of-grid rows): garbage / ignored
        # rows never reach the summed loss even if their per_tok is non-finite.
        row_ids = i * chunk + jax.lax.broadcasted_iota(jnp.int32, (chunk, 1), 0)
        valid = jnp.logical_and(tgt != IGNORE_IDX, row_ids < n_tokens)
        chunk_loss = jnp.sum(jnp.where(valid, per_tok, 0.0))
        # Distinct, (8,128)-aligned output block per chunk: unmasked vst, and safe
        # under a "parallel" chunk axis (no shared accumulator across cores).
        loss_ref[...] = jnp.broadcast_to(chunk_loss, loss_ref.shape)


def fused_backbone_ce_loss(emb, w1, lm_head_t, target, *, chunk=CHUNK, v_tile=V_TILE):
    """emb: [N, H] bf16, w1: [H, H] bf16, lm_head_t: [H, V] bf16, target: [N] int
    -> scalar f32 loss (sum of per-token CE over non-ignored tokens)."""
    n, h = emb.shape
    v = lm_head_t.shape[1]
    assert v % v_tile == 0, "pad the vocab to a multiple of V_TILE (padded columns would corrupt the running max)"
    g = pl.cdiv(n, chunk)          # token chunks (tail rows masked in-kernel)
    gv = v // v_tile               # vocab tiles (reduction axis)
    tgt2d = target.reshape(n, 1).astype(jnp.int32)

    partials = pl.pallas_call(
        partial(_fused_loss_kernel, n_tokens=n),
        out_shape=jax.ShapeDtypeStruct((g, 8, 128), jnp.float32),
        grid_spec=pltpu.PrefetchScalarGridSpec(
            num_scalar_prefetch=0,
            grid=(g, gv),
            in_specs=[
                pl.BlockSpec((chunk, 1), lambda i, j: (i, 0)),     # target ids
                pl.BlockSpec((chunk, h), lambda i, j: (i, 0)),     # token embeddings
                pl.BlockSpec((h, h), lambda i, j: (0, 0)),         # backbone weight
                pl.BlockSpec((h, v_tile), lambda i, j: (0, j)),    # lm_head tile [H, VT]
            ],
            # One lane-dense (8,128) block per token chunk; resident across the vocab
            # (reduction) axis, written only at its last step.
            out_specs=pl.BlockSpec((1, 8, 128), lambda i, j: (i, 0, 0)),
            scratch_shapes=[
                pltpu.VMEM((chunk, h), jnp.bfloat16),   # cached hidden (bf16 MXU input)
                pltpu.VMEM((chunk, 1), jnp.float32),    # running max
                pltpu.VMEM((chunk, 1), jnp.float32),    # running sum-exp
                pltpu.VMEM((chunk, 1), jnp.float32),    # target logit
            ],
        ),
        compiler_params=pltpu.CompilerParams(
            # Chunks are independent -> "parallel" (lets v7x shard them across its two
            # TensorCores); the vocab axis carries the online-logsumexp state ->
            # "arbitrary" and last in the grid.
            dimension_semantics=("parallel", "arbitrary"),
            # Headroom for scaled tiles; still below v7x's 64 MiB physical VMEM.
            vmem_limit_bytes=48 * 1024 * 1024,
        ),
    )(tgt2d, emb, w1, lm_head_t)
    return jnp.sum(partials[:, 0, 0])


# ------------------------------- WrapperModel.forward --------------------------------
def wrapper_forward(params, samples):
    src = samples["net_input"]["src_tokens"]             # [B, T] int32
    tgt = samples["target"].reshape(-1)                   # [N] int32
    # Embedding gather stays in XLA (glue).  The table is stored bf16, so the gather
    # emits bf16 activations directly — no separate cast pass over [N, H].
    emb = params["embed"][src].reshape(-1, H)              # [N, H] bf16
    loss = fused_backbone_ce_loss(emb, params["w1"], params["lm_head_t"], tgt)
    return loss, loss, samples["ntokens"], samples["nsentences"]


# --------------------------------- pure-JAX reference --------------------------------
def reference_forward(params, samples):
    # Same math / same bf16-input, f32-accumulation matmul numerics as the kernel,
    # but with a plain (non-online) logsumexp.
    src = samples["net_input"]["src_tokens"]
    tgt = samples["target"].reshape(-1)
    emb = params["embed"][src].reshape(-1, H)                          # bf16
    hidden = jnp.tanh(jnp.dot(emb, params["w1"],
                              preferred_element_type=jnp.float32))
    logits = jnp.dot(hidden.astype(jnp.bfloat16), params["lm_head_t"],
                     preferred_element_type=jnp.float32)
    lse = jax.nn.logsumexp(logits, axis=-1)
    safe_tgt = jnp.where(tgt == IGNORE_IDX, 0, tgt)
    tgt_logit = jnp.take_along_axis(logits, safe_tgt[:, None], axis=-1)[:, 0]
    losses = jnp.where(tgt == IGNORE_IDX, 0.0, lse - tgt_logit)
    return jnp.sum(losses)


if __name__ == "__main__":
    key = jax.random.PRNGKey(0)
    k_emb, k_w1, k_head, k_src, k_tgt, k_mask = jax.random.split(key, 6)

    # "Checkpoint" weights in f32 (PyTorch conventions: lm_head is [V, H]).
    embed_f32 = jax.random.normal(k_emb, (VOCAB, H), jnp.float32) * 0.5
    w1_f32 = jax.random.normal(k_w1, (H, H), jnp.float32) * 0.5
    lm_head_f32 = jax.random.normal(k_head, (VOCAB, H), jnp.float32) * 0.5

    # One-time conversion at model load (NOT per step): bf16 storage, lm_head
    # pre-transposed to [H, V] so the kernel consumes it with no per-step transpose.
    params = {
        "embed": embed_f32.astype(jnp.bfloat16),
        "w1": w1_f32.astype(jnp.bfloat16),
        "lm_head_t": lm_head_f32.T.astype(jnp.bfloat16),
    }

    src_tokens = jax.random.randint(k_src, (B, T), 0, VOCAB, jnp.int32)
    target = jax.random.randint(k_tgt, (B, T), 0, VOCAB, jnp.int32)
    ignore_mask = jax.random.bernoulli(k_mask, 0.25, (B, T))
    target = jnp.where(ignore_mask, IGNORE_IDX, target)

    samples = {
        "net_input": {"src_tokens": src_tokens},
        "target": target,
        "ntokens": jnp.sum(target != IGNORE_IDX).astype(jnp.int32),
        "nsentences": jnp.int32(B),
    }

    loss, loss_data, ntokens, nsentences = wrapper_forward(params, samples)
    jax.block_until_ready((loss, loss_data, ntokens, nsentences))

    ref = reference_forward(params, samples)
    assert jnp.isfinite(loss), "loss is not finite"
    assert jnp.allclose(loss, ref, rtol=1e-2, atol=1e-2), (loss, ref)

    print("KERNEL_OK")
</pallas_src>

<mosaic_0001>
module attributes {stable_mosaic.version = 11 : i64} {
  func.func @_fused_loss_kernel(%arg0: i32, %arg1: i32, %arg2: memref<128x1xi32, #tpu.memory_space<vmem>>, %arg3: memref<128x128xbf16, #tpu.memory_space<vmem>>, %arg4: memref<128x128xbf16, #tpu.memory_space<vmem>>, %arg5: memref<128x256xbf16, #tpu.memory_space<vmem>>, %arg6: memref<1x8x128xf32, #tpu.memory_space<vmem>>, %arg7: memref<128x128xbf16, #tpu.memory_space<vmem>>, %arg8: memref<128x1xf32, #tpu.memory_space<vmem>>, %arg9: memref<128x1xf32, #tpu.memory_space<vmem>>, %arg10: memref<128x1xf32, #tpu.memory_space<vmem>>) attributes {dimension_semantics = [#tpu.dimension_semantics<parallel>, #tpu.dimension_semantics<arbitrary>], iteration_bounds = array<i64: 2, 2>, scalar_prefetch = 0 : i64, scratch_operands = 4 : i64, tpu.core_type = #tpu.core_type<tc>, window_params = [{transform_indices = @transform_0, window_bounds = array<i64: 128, 1>}, {transform_indices = @transform_1, window_bounds = array<i64: 128, 128>}, {pipeline_mode = #tpu.pipeline_mode<synchronous>, transform_indices = @transform_2, window_bounds = array<i64: 128, 128>}, {transform_indices = @transform_3, window_bounds = array<i64: 128, 256>}, {transform_indices = @transform_4, window_bounds = array<i64: 1, 8, 128>}]} {
    %c0_i32 = arith.constant 0 : i32
    %0 = arith.cmpi eq, %arg1, %c0_i32 : i32
    %1 = arith.extui %0 : i1 to i32
    %c0_i32_0 = arith.constant 0 : i32
    %2 = arith.cmpi ne, %1, %c0_i32_0 : i32
    scf.if %2 {
      %c0_23 = arith.constant 0 : index
      %c0_24 = arith.constant 0 : index
      %39 = vector.load %arg3[%c0_23, %c0_24] : memref<128x128xbf16, #tpu.memory_space<vmem>>, vector<128x128xbf16>
      %c0_25 = arith.constant 0 : index
      %c0_26 = arith.constant 0 : index
      %40 = vector.load %arg4[%c0_25, %c0_26] : memref<128x128xbf16, #tpu.memory_space<vmem>>, vector<128x128xbf16>
      %cst_27 = arith.constant dense<0.000000e+00> : vector<128x128xf32>
      %41 = tpu.matmul %39, %40, %cst_27 {dimension_numbers = #tpu.dot_dimension_numbers<[1], [0], [0], [1], [0, 0, 1, 1], [], []>} : vector<128x128xbf16>, vector<128x128xbf16>, vector<128x128xf32> -> vector<128x128xf32>
      %42 = math.tanh %41 : vector<128x128xf32>
      %43 = arith.truncf %42 : vector<128x128xf32> to vector<128x128xbf16>
      %c0_28 = arith.constant 0 : index
      %c0_29 = arith.constant 0 : index
      %44 = vector.load %arg7[%c0_28, %c0_29] : memref<128x128xbf16, #tpu.memory_space<vmem>>, vector<128x128xbf16>
      tpu.vector_store %arg7[%c0_28, %c0_29], %43 {strides = array<i32>} : memref<128x128xbf16, #tpu.memory_space<vmem>>, vector<128x128xbf16>,
      %cst_30 = arith.constant 0xFF800000 : f32
      %45 = vector.broadcast %cst_30 : f32 to vector<128x1xf32>
      %c0_31 = arith.constant 0 : index
      %c0_32 = arith.constant 0 : index
      %46 = vector.load %arg8[%c0_31, %c0_32] : memref<128x1xf32, #tpu.memory_space<vmem>>, vector<128x1xf32>
      tpu.vector_store %arg8[%c0_31, %c0_32], %45 {strides = array<i32>} : memref<128x1xf32, #tpu.memory_space<vmem>>, vector<128x1xf32>,
      %cst_33 = arith.constant 0.000000e+00 : f32
      %47 = vector.broadcast %cst_33 : f32 to vector<128x1xf32>
      %c0_34 = arith.constant 0 : index
      %c0_35 = arith.constant 0 : index
      %48 = vector.load %arg9[%c0_34, %c0_35] : memref<128x1xf32, #tpu.memory_space<vmem>>, vector<128x1xf32>
      tpu.vector_store %arg9[%c0_34, %c0_35], %47 {strides = array<i32>} : memref<128x1xf32, #tpu.memory_space<vmem>>, vector<128x1xf32>,
      %cst_36 = arith.constant 0.000000e+00 : f32
      %49 = vector.broadcast %cst_36 : f32 to vector<128x1xf32>
      %c0_37 = arith.constant 0 : index
      %c0_38 = arith.constant 0 : index
      %50 = vector.load %arg10[%c0_37, %c0_38] : memref<128x1xf32, #tpu.memory_space<vmem>>, vector<128x1xf32>
      tpu.vector_store %arg10[%c0_37, %c0_38], %49 {strides = array<i32>} : memref<128x1xf32, #tpu.memory_space<vmem>>, vector<128x1xf32>,
    } else {
    }
    %c0 = arith.constant 0 : index
    %c0_1 = arith.constant 0 : index
    %3 = vector.load %arg7[%c0, %c0_1] : memref<128x128xbf16, #tpu.memory_space<vmem>>, vector<128x128xbf16>
    %c0_2 = arith.constant 0 : index
    %c0_3 = arith.constant 0 : index
    %4 = vector.load %arg5[%c0_2, %c0_3] : memref<128x256xbf16, #tpu.memory_space<vmem>>, vector<128x256xbf16>
    %cst = arith.constant dense<0.000000e+00> : vector<128x256xf32>
    %5 = tpu.matmul %3, %4, %cst {dimension_numbers = #tpu.dot_dimension_numbers<[1], [0], [0], [1], [0, 0, 1, 1], [], []>} : vector<128x128xbf16>, vector<128x256xbf16>, vector<128x256xf32> -> vector<128x256xf32>
    %c0_4 = arith.constant 0 : index
    %c0_5 = arith.constant 0 : index
    %6 = vector.load %arg8[%c0_4, %c0_5] : memref<128x1xf32, #tpu.memory_space<vmem>>, vector<128x1xf32>
    %cst_6 = arith.constant dense<0xFF800000> : vector<128xf32>
    %7 = vector.multi_reduction <maximumf>, %5, %cst_6 [1] : vector<128x256xf32> to vector<128xf32>
    %8 = vector.shape_cast %7 : vector<128xf32> to vector<128x1xf32>
    %9 = arith.maximumf %6, %8 : vector<128x1xf32>
    %10 = arith.subf %6, %9 : vector<128x1xf32>
    %11 = math.exp %10 : vector<128x1xf32>
    %12 = vector.broadcast %9 : vector<128x1xf32> to vector<128x256xf32>
    %13 = arith.subf %5, %12 : vector<128x256xf32>
    %14 = math.exp %13 : vector<128x256xf32>
    %c0_7 = arith.constant 0 : index
    %c0_8 = arith.constant 0 : index
    %15 = vector.load %arg9[%c0_7, %c0_8] : memref<128x1xf32, #tpu.memory_space<vmem>>, vector<128x1xf32>
    %16 = arith.mulf %11, %15 : vector<128x1xf32>
    %cst_9 = arith.constant dense<0.000000e+00> : vector<128xf32>
    %17 = vector.multi_reduction <add>, %14, %cst_9 [1] : vector<128x256xf32> to vector<128xf32>
    %18 = vector.shape_cast %17 : vector<128xf32> to vector<128x1xf32>
    %19 = arith.addf %16, %18 : vector<128x1xf32>
    %c0_10 = arith.constant 0 : index
    %c0_11 = arith.constant 0 : index
    %20 = vector.load %arg9[%c0_10, %c0_11] : memref<128x1xf32, #tpu.memory_space<vmem>>, vector<128x1xf32>
    tpu.vector_store %arg9[%c0_10, %c0_11], %19 {strides = array<i32>} : memref<128x1xf32, #tpu.memory_space<vmem>>, vector<128x1xf32>,
    %c0_12 = arith.constant 0 : index
    %c0_13 = arith.constant 0 : index
    %21 = vector.load %arg8[%c0_12, %c0_13] : memref<128x1xf32, #tpu.memory_space<vmem>>, vector<128x1xf32>
    tpu.vector_store %arg8[%c0_12, %c0_13], %9 {strides = array<i32>} : memref<128x1xf32, #tpu.memory_space<vmem>>, vector<128x1xf32>,
    %c0_14 = arith.constant 0 : index
    %c0_15 = arith.constant 0 : index
    %22 = vector.load %arg2[%c0_14, %c0_15] : memref<128x1xi32, #tpu.memory_space<vmem>>, vector<128x1xi32>
    %c256_i32 = arith.constant 256 : i32
    %23 = arith.muli %arg1, %c256_i32 : i32
    %24 = tpu.iota {dimensions = array<i32: 1>} : vector<128x256xi32>
    %25 = vector.broadcast %23 : i32 to vector<128x256xi32>
    %26 = arith.addi %25, %24 : vector<128x256xi32>
    %c0_16 = arith.constant 0 : index
    %c0_17 = arith.constant 0 : index
    %27 = vector.load %arg10[%c0_16, %c0_17] : memref<128x1xf32, #tpu.memory_space<vmem>>, vector<128x1xf32>
    %28 = vector.broadcast %22 : vector<128x1xi32> to vector<128x256xi32>
    %29 = arith.cmpi eq, %26, %28 : vector<128x256xi32>
    %cst_18 = arith.constant 0.000000e+00 : f32
    %30 = vector.broadcast %cst_18 : f32 to vector<128x256xf32>
    %31 = arith.select %29, %5, %30 : vector<128x256xi1>, vector<128x256xf32>
    %cst_19 = arith.constant dense<0.000000e+00> : vector<128xf32>
    %32 = vector.multi_reduction <add>, %31, %cst_19 [1] : vector<128x256xf32> to vector<128xf32>
    %33 = vector.shape_cast %32 : vector<128xf32> to vector<128x1xf32>
    %34 = arith.addf %27, %33 : vector<128x1xf32>
    %c0_20 = arith.constant 0 : index
    %c0_21 = arith.constant 0 : index
    %35 = vector.load %arg10[%c0_20, %c0_21] : memref<128x1xf32, #tpu.memory_space<vmem>>, vector<128x1xf32>
    tpu.vector_store %arg10[%c0_20, %c0_21], %34 {strides = array<i32>} : memref<128x1xf32, #tpu.memory_space<vmem>>, vector<128x1xf32>,
    %c1_i32 = arith.constant 1 : i32
    %36 = arith.cmpi eq, %arg1, %c1_i32 : i32
    %37 = arith.extui %36 : i1 to i32
    %c0_i32_22 = arith.constant 0 : i32
    %38 = arith.cmpi ne, %37, %c0_i32_22 : i32
    scf.if %38 {
      %c0_23 = arith.constant 0 : index
      %c0_24 = arith.constant 0 : index
      %39 = vector.load %arg8[%c0_23, %c0_24] : memref<128x1xf32, #tpu.memory_space<vmem>>, vector<128x1xf32>
      %c0_25 = arith.constant 0 : index
      %c0_26 = arith.constant 0 : index
      %40 = vector.load %arg9[%c0_25, %c0_26] : memref<128x1xf32, #tpu.memory_space<vmem>>, vector<128x1xf32>
      %41 = math.log %40 : vector<128x1xf32>
      %42 = arith.addf %39, %41 : vector<128x1xf32>
      %c0_27 = arith.constant 0 : index
      %c0_28 = arith.constant 0 : index
      %43 = vector.load %arg10[%c0_27, %c0_28] : memref<128x1xf32, #tpu.memory_space<vmem>>, vector<128x1xf32>
      %44 = arith.subf %42, %43 : vector<128x1xf32>
      %c128_i32 = arith.constant 128 : i32
      %45 = arith.muli %arg0, %c128_i32 : i32
      %46 = tpu.iota {dimensions = array<i32: 0>} : vector<128x1xi32>
      %47 = vector.broadcast %45 : i32 to vector<128x1xi32>
      %48 = arith.addi %47, %46 : vector<128x1xi32>
      %c-100_i32 = arith.constant -100 : i32
      %49 = vector.broadcast %c-100_i32 : i32 to vector<128x1xi32>
      %50 = arith.cmpi ne, %22, %49 : vector<128x1xi32>
      %c256_i32_29 = arith.constant 256 : i32
      %51 = vector.broadcast %c256_i32_29 : i32 to vector<128x1xi32>
      %52 = arith.cmpi slt, %48, %51 : vector<128x1xi32>
      %53 = arith.andi %50, %52 : vector<128x1xi1>
      %cst_30 = arith.constant 0.000000e+00 : f32
      %54 = vector.broadcast %cst_30 : f32 to vector<128x1xf32>
      %55 = arith.select %53, %44, %54 : vector<128x1xi1>, vector<128x1xf32>
      %56 = vector.shape_cast %55 : vector<128x1xf32> to vector<1x128x1xf32>
      %cst_31 = arith.constant dense<0.000000e+00> : vector<1xf32>
      %57 = vector.multi_reduction <add>, %56, %cst_31 [1, 2] : vector<1x128x1xf32> to vector<1xf32>
      %58 = vector.shape_cast %57 : vector<1xf32> to vector<1x1x1xf32>
      %59 = vector.extract %58[0, 0, 0] : f32 from vector<1x1x1xf32>
      %60 = vector.broadcast %59 : f32 to vector<1x8x128xf32>
      %c0_32 = arith.constant 0 : index
      %c0_33 = arith.constant 0 : index
      %c0_34 = arith.constant 0 : index
      %61 = vector.load %arg6[%c0_32, %c0_33, %c0_34] : memref<1x8x128xf32, #tpu.memory_space<vmem>>, vector<1x8x128xf32>
      tpu.vector_store %arg6[%c0_32, %c0_33, %c0_34], %60 {strides = array<i32>} : memref<1x8x128xf32, #tpu.memory_space<vmem>>, vector<1x8x128xf32>,
    } else {
    }
    return
  }
  func.func @transform_0(%arg0: i32, %arg1: i32) -> (i32, i32) {
    %c0_i32 = arith.constant 0 : i32
    %c0_i32_0 = arith.constant 0 : i32
    return %arg0, %c0_i32 : i32, i32
  }
  func.func @transform_1(%arg0: i32, %arg1: i32) -> (i32, i32) {
    %c0_i32 = arith.constant 0 : i32
    %c0_i32_0 = arith.constant 0 : i32
    return %arg0, %c0_i32 : i32, i32
  }
  func.func @transform_2(%arg0: i32, %arg1: i32) -> (i32, i32) {
    %c0_i32 = arith.constant 0 : i32
    %c0_i32_0 = arith.constant 0 : i32
    %c0_i32_1 = arith.constant 0 : i32
    return %c0_i32, %c0_i32_0 : i32, i32
  }
  func.func @transform_3(%arg0: i32, %arg1: i32) -> (i32, i32) {
    %c0_i32 = arith.constant 0 : i32
    %c0_i32_0 = arith.constant 0 : i32
    return %c0_i32, %arg1 : i32, i32
  }
  func.func @transform_4(%arg0: i32, %arg1: i32) -> (i32, i32, i32) {
    %c0_i32 = arith.constant 0 : i32
    %c0_i32_0 = arith.constant 0 : i32
    %c0_i32_1 = arith.constant 0 : i32
    return %arg0, %c0_i32, %c0_i32_0 : i32, i32, i32
  }
}

</mosaic_0001>

<llo_original>
// kernel: tpu_custom_call.1
$region0: #{tpu_custom_call.1}
  #allocation0 [shape = 'u32[]', space=smem, size = 0x4, offset = 0x4, fixed_abs, tag = 'smem constant byte address 0x4 - core index']
  #allocation1 [shape = 'u32[72,128]{1,0:T(1,128)}', space=vmem, size = 0x9000, scoped, tag = 'internal scratch']
  #allocation2 [shape = 'bf16[128,128]{1,0:T(8,128)(2,1)}', space=vmem, size = 0x8000, scoped, tag = 'scratch operand']
  #allocation3 [shape = 'f32[128,1]{1,0:T(8,128)}', space=vmem, size = 0x10000, scoped, tag = 'scratch operand']
  #allocation4 [shape = 'f32[128,1]{1,0:T(8,128)}', space=vmem, size = 0x10000, scoped, tag = 'scratch operand']
  #allocation5 [shape = 'f32[128,1]{1,0:T(8,128)}', space=vmem, size = 0x10000, scoped, tag = 'scratch operand']
  %s0 = inlined_call_operand.vmem [shape: s32[256,1], index: 0, kind: input, shape index: {}]
  %s1 = inlined_call_operand.hbm [shape: bf16[256,128], index: 1, kind: input, shape index: {}]
  %s2 = inlined_call_operand.hbm [shape: bf16[128,128], index: 2, kind: input, shape index: {}]
  %s3 = inlined_call_operand.vmem [shape: bf16[128,512], index: 3, kind: input, shape index: {}]
  %s4 = inlined_call_operand.hbm [shape: f32[2,8,128], index: 4, kind: output, shape index: {}]
  %s5 = sld [smem:[#allocation0]]
  $region103: #{tpu_custom_call.1} parent=0
    _
  %s7 = ssub.s32 1, %s5
  %s8 = scalar_select 0, %s7, %s5
  $region1: #{tpu_custom_call.1} parent=0
    #allocation6 [shape = 'u8[65536]{0}', space=vmem, size = 0x10000, scoped, tag = 'input window, operand 1']
    #allocation7 [shape = 's32[2]{0}', space=sflag, size = 0x8, scoped, tag = 'scoped memory for tpu_custom_call.1']
    #allocation8 [shape = 's32[2]{0}', space=sflag, size = 0x8, scoped, tag = 'scoped memory for tpu_custom_call.1']
    #allocation9 [shape = 'u8[32768]{0}', space=vmem, size = 0x8000, scoped, tag = 'input window, operand 2, single buffered']
    #allocation10 [shape = 's32[1]{0}', space=sflag, size = 0x4, scoped, tag = 'scoped memory for tpu_custom_call.1']
    #allocation11 [shape = 'u8[131072]{0}', space=vmem, size = 0x20000, scoped, tag = 'input window, operand 3']
    #allocation12 [shape = 'u8[8192]{0}', space=vmem, size = 0x2000, scoped, tag = 'output window, operand 0']
    %9 = vsyncpa [#allocation7], 0
    %s10 = scalar_lea.sflag [#allocation7], 1
    %11 = vsyncpa %s10, 0
    %12 = vsyncpa [#allocation10], 0
    %13 = vsyncpa [#allocation8], 0
    %s14 = scalar_lea.sflag [#allocation8], 1
    %15 = vsyncpa %s14, 0
    loop: start=0, step=1, limit=6
    $region2: #{tpu_custom_call.1} parent=1 // loop_pre_header
      _
    $region3: #{tpu_custom_call.1} parent=1 // loop_header
      %s17 = sphi 0, %s21
      %p18 = scmp.ge.s32.totalorder %s17, 6
      %s24 = sphi 0, %s36
      %s25 = sphi 0, %s32
      %s26 = sphi 0, %s24
      %s27 = sphi 0, %s25
      %s28 = sphi 0, %s26
      %s29 = sphi 0, %s27
      %s39 = sphi 0, %s41
      %s42 = sphi 0, %s39
      %s43 = sphi 0, %s42
      %s59 = sphi 0, %s43
      %s65 = sphi 0, %s67
      %s68 = sphi 0, %s65
      %s69 = sphi 0, %s68
      %s85 = sphi 0, %s69
      %s89 = sphi 0, %s89
      %s91 = sphi 0, %s89
      %s92 = sphi 0, %s91
      %s106 = sphi 0, %s92
      %s112 = sphi 0, %s114
      %s115 = sphi 0, %s112
      %s116 = sphi 0, %s115
      %s132 = sphi 0, %s116
      %s138 = sphi 0, %s140
      %s141 = sphi 0, %s138
      %s142 = sphi 0, %s141
      %s158 = sphi 0, %s142
    $region4: #{tpu_custom_call.1} parent=1 // loop_header_branch
      %20 = sbr.rel (%p18) target = $region8
    $region5: #{tpu_custom_call.1} parent=1 // loop_body
      %s22 = ssub.s32 %s17, 1
      %s23 = ssub.s32 %s17, 2
      %s30 = sadd.s32 1, %s25
      %p31 = scmp.ge.s32.totalorder %s30, 2
      %s32 = scalar_select %p31, 0, %s30
      %s33 = sadd.s32 1, %s24
      %s34 = scalar_select %p31, %s33, %s24
      %p35 = scmp.ge.s32.totalorder %s34, 2
      %s36 = scalar_select %p35, 0, %s34
      %s37 = ssub.s32 %s24, %s36
      %p38 = scmp.eq.s32.totalorder %s37, 0
      %s40 = sadd.s32 %s39, 1
      %s41 = scalar_select %p38, %s39, %s40
      %p44 = pneg %p38
      %p45 = scmp.eq.s32.totalorder %s17, 3
      %p46 = por %p44, %p45
      %p47 = scmp.ne.s32.totalorder %s39, %s42
      %p48 = scmp.eq.s32.totalorder %s17, 0
      %p49 = por %p47, %p48
      %p50 = scmp.ne.s32.totalorder %s39, %s42
      %p51 = scmp.eq.s32.totalorder %s22, 3
      %p52 = por %p50, %p51
      %p53 = scmp.ne.s32.totalorder %s42, %s43
      %p54 = scmp.eq.s32.totalorder %s22, 0
      %p55 = por %p53, %p54
      %p56 = scmp.ne.s32.totalorder %s42, %s43
      %p57 = scmp.eq.s32.totalorder %s23, 3
      %p58 = por %p56, %p57
      %p60 = scmp.ne.s32.totalorder %s43, %s59
      %p61 = scmp.eq.s32.totalorder %s23, 0
      %p62 = por %p60, %p61
      %s63 = ssub.s32 %s24, %s36
      %p64 = scmp.eq.s32.totalorder %s63, 0
      %s66 = sadd.s32 %s65, 1
      %s67 = scalar_select %p64, %s65, %s66
      %p70 = pneg %p64
      %p71 = scmp.eq.s32.totalorder %s17, 3
      %p72 = por %p70, %p71
      %p73 = scmp.ne.s32.totalorder %s65, %s68
      %p74 = scmp.eq.s32.totalorder %s17, 0
      %p75 = por %p73, %p74
      %p76 = scmp.ne.s32.totalorder %s65, %s68
      %p77 = scmp.eq.s32.totalorder %s22, 3
      %p78 = por %p76, %p77
      %p79 = scmp.ne.s32.totalorder %s68, %s69
      %p80 = scmp.eq.s32.totalorder %s22, 0
      %p81 = por %p79, %p80
      %p82 = scmp.ne.s32.totalorder %s68, %s69
      %p83 = scmp.eq.s32.totalorder %s23, 3
      %p84 = por %p82, %p83
      %p86 = scmp.ne.s32.totalorder %s69, %s85
      %p87 = scmp.eq.s32.totalorder %s23, 0
      %p88 = por %p86, %p87
      %s90 = sadd.s32 %s89, 1
      %p93 = scmp.eq.s32.totalorder %s17, 3
      %p94 = scmp.ne.s32.totalorder %s89, %s91
      %p95 = scmp.eq.s32.totalorder %s17, 0
      %p96 = por %p94, %p95
      %p97 = scmp.ne.s32.totalorder %s89, %s91
      %p98 = scmp.eq.s32.totalorder %s22, 3
      %p99 = por %p97, %p98
      %p100 = scmp.ne.s32.totalorder %s91, %s92
      %p101 = scmp.eq.s32.totalorder %s22, 0
      %p102 = por %p100, %p101
      %p103 = scmp.ne.s32.totalorder %s91, %s92
      %p104 = scmp.eq.s32.totalorder %s23, 3
      %p105 = por %p103, %p104
      %p107 = scmp.ne.s32.totalorder %s92, %s106
      %p108 = scmp.eq.s32.totalorder %s23, 0
      %p109 = por %p107, %p108
      %s110 = ssub.s32 %s25, %s32
      %p111 = scmp.eq.s32.totalorder %s110, 0
      %s113 = sadd.s32 %s112, 1
      %s114 = scalar_select %p111, %s112, %s113
      %p117 = pneg %p111
      %p118 = scmp.eq.s32.totalorder %s17, 3
      %p119 = por %p117, %p118
      %p120 = scmp.ne.s32.totalorder %s112, %s115
      %p121 = scmp.eq.s32.totalorder %s17, 0
      %p122 = por %p120, %p121
      %p123 = scmp.ne.s32.totalorder %s112, %s115
      %p124 = scmp.eq.s32.totalorder %s22, 3
      %p125 = por %p123, %p124
      %p126 = scmp.ne.s32.totalorder %s115, %s116
      %p127 = scmp.eq.s32.totalorder %s22, 0
      %p128 = por %p126, %p127
      %p129 = scmp.ne.s32.totalorder %s115, %s116
      %p130 = scmp.eq.s32.totalorder %s23, 3
      %p131 = por %p129, %p130
      %p133 = scmp.ne.s32.totalorder %s116, %s132
      %p134 = scmp.eq.s32.totalorder %s23, 0
      %p135 = por %p133, %p134
      %s136 = ssub.s32 %s24, %s36
      %p137 = scmp.eq.s32.totalorder %s136, 0
      %s139 = sadd.s32 %s138, 1
      %s140 = scalar_select %p137, %s138, %s139
      %p143 = pneg %p137
      %p144 = scmp.eq.s32.totalorder %s17, 3
      %p145 = por %p143, %p144
      %p146 = scmp.ne.s32.totalorder %s138, %s141
      %p147 = scmp.eq.s32.totalorder %s17, 0
      %p148 = por %p146, %p147
      %p149 = scmp.ne.s32.totalorder %s138, %s141
      %p150 = scmp.eq.s32.totalorder %s22, 3
      %p151 = por %p149, %p150
      %p152 = scmp.ne.s32.totalorder %s141, %s142
      %p153 = scmp.eq.s32.totalorder %s22, 0
      %p154 = por %p152, %p153
      %p155 = scmp.ne.s32.totalorder %s141, %s142
      %p156 = scmp.eq.s32.totalorder %s23, 3
      %p157 = por %p155, %p156
      %p159 = scmp.ne.s32.totalorder %s142, %s158
      %p160 = scmp.eq.s32.totalorder %s23, 0
      %p161 = por %p159, %p160
      %p162 = scmp.le.s32.totalorder 1, %s17
      %p163 = scmp.lt.s32.totalorder %s17, 5
      %p164 = pnand %p162, %p163
      %p165 = pneg %p164
      // Predicated region
      $region9: #{tpu_custom_call.1} parent=5 // pred_check
        _
      $region10: #{tpu_custom_call.1} parent=5 // pred_check_branch
        %167 = sbr.rel (%p164) target = $region12
      $region11: #{tpu_custom_call.1} parent=5 // pred_region
        %s168 = ssub.s32 %s17, 1
        // Predicated region
        $region13: #{tpu_custom_call.1} parent=11 // pred_check
          %p169 = pneg %p102
        $region14: #{tpu_custom_call.1} parent=11 // pred_check_branch
          %171 = sbr.rel (%p169) target = $region16
        $region15: #{tpu_custom_call.1} parent=11 // pred_region
          %173 = vsyncadd [#allocation10], 0
          %s174 = sshll.u32 %s2, 4
          %s175 = int_to_ptr.hbm [resolvable:$true] %s174
          %s176 = sshll.u32 [#allocation9], 4
          %s177 = int_to_ptr.vmem [resolvable:$true] %s176
          %182 = dma.hbm_to_vmem [thread:$0]  %s175, 1024, %s177, [#allocation10], 64, 64, 4
        $region16: #{tpu_custom_call.1} parent=11 // pred_fallthru
          _
      $region12: #{tpu_custom_call.1} parent=5 // pred_fallthru
        _
      %p183 = scmp.lt.s32.totalorder %s17, 4
      // Predicated region
      $region17: #{tpu_custom_call.1} parent=5 // pred_check
        %p184 = pneg %p183
      $region18: #{tpu_custom_call.1} parent=5 // pred_check_branch
        %186 = sbr.rel (%p184) target = $region20
      $region19: #{tpu_custom_call.1} parent=5 // pred_region
        // Predicated region
        $region21: #{tpu_custom_call.1} parent=19 // pred_check
          %p187 = pneg %p49
        $region22: #{tpu_custom_call.1} parent=19 // pred_check_branch
          %189 = sbr.rel (%p187) target = $region24
        $region23: #{tpu_custom_call.1} parent=19 // pred_region
          %s190 = smul.u32 16, %s24
          %p191 = scmp.lt.s32.totalorder %s190, 31
          %s192 = scalar_select %p191, %s190, 31
          %s193 = smul.addr %s192, 8
          %s194 = scalar_lea.vmem %s0, %s193
          %s195 = smul.u32 16, %s24
        $region24: #{tpu_custom_call.1} parent=19 // pred_fallthru
          _
        // Predicated region
        $region25: #{tpu_custom_call.1} parent=19 // pred_check
          %p196 = pneg %p75
        $region26: #{tpu_custom_call.1} parent=19 // pred_check_branch
          %198 = sbr.rel (%p196) target = $region28
        $region27: #{tpu_custom_call.1} parent=19 // pred_region
          %s199 = sand.u32 %s65, 1
          %s200 = scalar_lea.sflag [#allocation7], %s199
          %s201 = sand.u32 %s65, 1
          %s202 = smul.addr %s201, 64
          %s203 = scalar_lea.vmem [#allocation6], %s202
          %s204 = smul.u32 16, %s24
          %206 = vsyncadd %s200, 0
          %s207 = smul.addr %s204, 4
          %s208 = scalar_lea.hbm %s1, %s207
          %s209 = sshll.u32 %s208, 4
          %s210 = int_to_ptr.hbm [resolvable:$true] %s209
          %s211 = sshll.u32 %s203, 4
          %s212 = int_to_ptr.vmem [resolvable:$true] %s211
          %217 = dma.hbm_to_vmem [thread:$0]  %s210, 1024, %s212, %s200, 64, 64, 4
        $region28: #{tpu_custom_call.1} parent=19 // pred_fallthru
          _
        // Predicated region
        $region29: #{tpu_custom_call.1} parent=19 // pred_check
          %p218 = pneg %p122
        $region30: #{tpu_custom_call.1} parent=19 // pred_check_branch
          %220 = sbr.rel (%p218) target = $region32
        $region31: #{tpu_custom_call.1} parent=19 // pred_region
          %s221 = sand.u32 %s112, 1
          %s222 = sand.u32 %s112, 1
          %s223 = smul.addr %s222, 128
          %s224 = scalar_lea.vmem [#allocation11], %s223
          %s225 = smul.u32 2, %s25
          %s226 = smul.addr %s225, 4
          %s227 = scalar_lea.vmem %s3, %s226
          // Predicated region
          $region33: #{tpu_custom_call.1} parent=31 // pred_check
            _
          $region34: #{tpu_custom_call.1} parent=31 // pred_check_branch
            %229 = sbr.rel (0) target = $region36
          $region35: #{tpu_custom_call.1} parent=31 // pred_region
            // Predicated region
            $region37: #{tpu_custom_call.1} parent=35 // pred_check
              _
            $region38: #{tpu_custom_call.1} parent=35 // pred_check_branch
              %231 = sbr.rel (0) target = $region40
            $region39: #{tpu_custom_call.1} parent=35 // pred_region
              // Predicated region
              $region52: #{tpu_custom_call.1} parent=39 // pred_check
                _
              $region53: #{tpu_custom_call.1} parent=39 // pred_check_branch
                %277 = sbr.rel (0) target = $region55
              $region54: #{tpu_custom_call.1} parent=39 // pred_region
                loop: start=0, step=1, limit=1
                $region56: #{tpu_custom_call.1} parent=54 // loop_pre_header
                  _
                $region57: #{tpu_custom_call.1} parent=54 // loop_header
                  %s279 = sphi 0, %s283
                  %p280 = scmp.ge.s32.totalorder %s279, 1
                  %s284 = sphi %s227, %s227
                  %s285 = sphi %s224, %s224
                $region58: #{tpu_custom_call.1} parent=54 // loop_header_branch
                  %282 = sbr.rel (%p280) target = $region62
                $region59: #{tpu_custom_call.1} parent=54 // loop_body
                  %v286 = vld [vmem:[%s284] sm:$0xff]
                  %287 = vst [vmem:[%s285] sm:$0xff] %v286
                  %v288 = vld [vmem:[%s284 + $0x10] sm:$0xff]
                  %289 = vst [vmem:[%s285 + $0x8] sm:$0xff] %v288
                  %v290 = vld [vmem:[%s284 + $0x20] sm:$0xff]
                  %291 = vst [vmem:[%s285 + $0x10] sm:$0xff] %v290
                  %v292 = vld [vmem:[%s284 + $0x30] sm:$0xff]
                  %293 = vst [vmem:[%s285 + $0x18] sm:$0xff] %v292
                  %v294 = vld [vmem:[%s284 + $0x40] sm:$0xff]
                  %295 = vst [vmem:[%s285 + $0x20] sm:$0xff] %v294
                  %v296 = vld [vmem:[%s284 + $0x50] sm:$0xff]
                  %297 = vst [vmem:[%s285 + $0x28] sm:$0xff] %v296
                  %v298 = vld [vmem:[%s284 + $0x60] sm:$0xff]
                  %299 = vst [vmem:[%s285 + $0x30] sm:$0xff] %v298
                  %v300 = vld [vmem:[%s284 + $0x70] sm:$0xff]
                  %301 = vst [vmem:[%s285 + $0x38] sm:$0xff] %v300
                  %v302 = vld [vmem:[%s284 + $0x80] sm:$0xff]
                  %303 = vst [vmem:[%s285 + $0x40] sm:$0xff] %v302
                  %v304 = vld [vmem:[%s284 + $0x90] sm:$0xff]
                  %305 = vst [vmem:[%s285 + $0x48] sm:$0xff] %v304
                  %v306 = vld [vmem:[%s284 + $0xa0] sm:$0xff]
                  %307 = vst [vmem:[%s285 + $0x50] sm:$0xff] %v306
                  %v308 = vld [vmem:[%s284 + $0xb0] sm:$0xff]
                  %309 = vst [vmem:[%s285 + $0x58] sm:$0xff] %v308
                  %v310 = vld [vmem:[%s284 + $0xc0] sm:$0xff]
                  %311 = vst [vmem:[%s285 + $0x60] sm:$0xff] %v310
                  %v312 = vld [vmem:[%s284 + $0xd0] sm:$0xff]
                  %313 = vst [vmem:[%s285 + $0x68] sm:$0xff] %v312
                  %v314 = vld [vmem:[%s284 + $0xe0] sm:$0xff]
                  %315 = vst [vmem:[%s285 + $0x70] sm:$0xff] %v314
                  %v316 = vld [vmem:[%s284 + $0xf0] sm:$0xff]
                  %317 = vst [vmem:[%s285 + $0x78] sm:$0xff] %v316
                $region60: #{tpu_custom_call.1} parent=54 // loop_footer
                  %s283 = sadd.s32 1, %s279
                $region61: #{tpu_custom_call.1} parent=54 // loop_footer_branch
                  %278 = sbr.rel target = $region57
                $region62: #{tpu_custom_call.1} parent=54 // loop_exit
                  _
              $region55: #{tpu_custom_call.1} parent=39 // pred_fallthru
                _
              // Predicated region
              $region63: #{tpu_custom_call.1} parent=39 // pred_check
                _
              $region64: #{tpu_custom_call.1} parent=39 // pred_check_branch
                %319 = sbr.rel target = $region66
              $region65: #{tpu_custom_call.1} parent=39 // pred_region
                _
              $region66: #{tpu_custom_call.1} parent=39 // pred_fallthru
                _
            $region40: #{tpu_custom_call.1} parent=35 // pred_fallthru
              _
            // Predicated region
            $region41: #{tpu_custom_call.1} parent=35 // pred_check
              _
            $region42: #{tpu_custom_call.1} parent=35 // pred_check_branch
              %233 = sbr.rel target = $region44
            $region43: #{tpu_custom_call.1} parent=35 // pred_region
              %s235 = ssub.s32 256, 1
              loop: start=0, step=1, limit=1
              $region45: #{tpu_custom_call.1} parent=43 // loop_pre_header
                _
              $region46: #{tpu_custom_call.1} parent=43 // loop_header
                %s237 = sphi 0, %s241
                %p238 = scmp.ge.s32.totalorder %s237, 1
                %s242 = sphi %s227, %s227
                %s243 = sphi %s224, %s224
              $region47: #{tpu_custom_call.1} parent=43 // loop_header_branch
                %240 = sbr.rel (%p238) target = $region51
              $region48: #{tpu_custom_call.1} parent=43 // loop_body
                %v244 = vld [vmem:[%s242] sm:%s235]
                %245 = vst [vmem:[%s243] sm:%s235] %v244
                %v246 = vld [vmem:[%s242 + $0x10] sm:%s235]
                %247 = vst [vmem:[%s243 + $0x8] sm:%s235] %v246
                %v248 = vld [vmem:[%s242 + $0x20] sm:%s235]
                %249 = vst [vmem:[%s243 + $0x10] sm:%s235] %v248
                %v250 = vld [vmem:[%s242 + $0x30] sm:%s235]
                %251 = vst [vmem:[%s243 + $0x18] sm:%s235] %v250
                %v252 = vld [vmem:[%s242 + $0x40] sm:%s235]
                %253 = vst [vmem:[%s243 + $0x20] sm:%s235] %v252
                %v254 = vld [vmem:[%s242 + $0x50] sm:%s235]
                %255 = vst [vmem:[%s243 + $0x28] sm:%s235] %v254
                %v256 = vld [vmem:[%s242 + $0x60] sm:%s235]
                %257 = vst [vmem:[%s243 + $0x30] sm:%s235] %v256
                %v258 = vld [vmem:[%s242 + $0x70] sm:%s235]
                %259 = vst [vmem:[%s243 + $0x38] sm:%s235] %v258
                %v260 = vld [vmem:[%s242 + $0x80] sm:%s235]
                %261 = vst [vmem:[%s243 + $0x40] sm:%s235] %v260
                %v262 = vld [vmem:[%s242 + $0x90] sm:%s235]
                %263 = vst [vmem:[%s243 + $0x48] sm:%s235] %v262
                %v264 = vld [vmem:[%s242 + $0xa0] sm:%s235]
                %265 = vst [vmem:[%s243 + $0x50] sm:%s235] %v264
                %v266 = vld [vmem:[%s242 + $0xb0] sm:%s235]
                %267 = vst [vmem:[%s243 + $0x58] sm:%s235] %v266
                %v268 = vld [vmem:[%s242 + $0xc0] sm:%s235]
                %269 = vst [vmem:[%s243 + $0x60] sm:%s235] %v268
                %v270 = vld [vmem:[%s242 + $0xd0] sm:%s235]
                %271 = vst [vmem:[%s243 + $0x68] sm:%s235] %v270
                %v272 = vld [vmem:[%s242 + $0xe0] sm:%s235]
                %273 = vst [vmem:[%s243 + $0x70] sm:%s235] %v272
                %v274 = vld [vmem:[%s242 + $0xf0] sm:%s235]
                %275 = vst [vmem:[%s243 + $0x78] sm:%s235] %v274
              $region49: #{tpu_custom_call.1} parent=43 // loop_footer
                %s241 = sadd.s32 1, %s237
              $region50: #{tpu_custom_call.1} parent=43 // loop_footer_branch
                %236 = sbr.rel target = $region46
              $region51: #{tpu_custom_call.1} parent=43 // loop_exit
                _
            $region44: #{tpu_custom_call.1} parent=35 // pred_fallthru
              _
          $region36: #{tpu_custom_call.1} parent=31 // pred_fallthru
            _
          %320 = vnop
        $region32: #{tpu_custom_call.1} parent=19 // pred_fallthru
          _
      $region20: #{tpu_custom_call.1} parent=5 // pred_fallthru
        _
      %p321 = scmp.le.s32.totalorder 1, %s17
      %p322 = scmp.lt.s32.totalorder %s17, 5
      %p323 = pnand %p321, %p322
      %p324 = pneg %p323
      // Predicated region
      $region67: #{tpu_custom_call.1} parent=5 // pred_check
        _
      $region68: #{tpu_custom_call.1} parent=5 // pred_check_branch
        %326 = sbr.rel (%p323) target = $region70
      $region69: #{tpu_custom_call.1} parent=5 // pred_region
        %s327 = ssub.s32 %s17, 1
        %s328 = sand.u32 %s68, 1
        %s329 = scalar_lea.sflag [#allocation7], %s328
        %s330 = sand.u32 %s68, 1
        %s331 = smul.addr %s330, 64
        %s332 = scalar_lea.vmem [#allocation6], %s331
        // Predicated region
        $region71: #{tpu_custom_call.1} parent=69 // pred_check
          %p333 = pneg %p81
        $region72: #{tpu_custom_call.1} parent=69 // pred_check_branch
          %335 = sbr.rel (%p333) target = $region74
        $region73: #{tpu_custom_call.1} parent=69 // pred_region
          %337 = dma.done %s329, 1024
        $region74: #{tpu_custom_call.1} parent=69 // pred_fallthru
          _
        // Predicated region
        $region75: #{tpu_custom_call.1} parent=69 // pred_check
          %p338 = pneg %p102
        $region76: #{tpu_custom_call.1} parent=69 // pred_check_branch
          %340 = sbr.rel (%p338) target = $region78
        $region77: #{tpu_custom_call.1} parent=69 // pred_region
          %342 = dma.done [#allocation10], 1024
        $region78: #{tpu_custom_call.1} parent=69 // pred_fallthru
          _
        %s343 = sand.u32 %s115, 1
        %s344 = sand.u32 %s115, 1
        %s345 = smul.addr %s344, 128
        %s346 = scalar_lea.vmem [#allocation11], %s345
        // Predicated region
        $region79: #{tpu_custom_call.1} parent=69 // pred_check
          %p347 = pneg %p128
        $region80: #{tpu_custom_call.1} parent=69 // pred_check_branch
          %349 = sbr.rel (%p347) target = $region82
        $region81: #{tpu_custom_call.1} parent=69 // pred_region
          _
        $region82: #{tpu_custom_call.1} parent=69 // pred_fallthru
          _
        %s350 = smul.u32 16, %s26
        %p351 = scmp.lt.s32.totalorder %s350, 31
        %s352 = scalar_select %p351, %s350, 31
        %s353 = smul.addr %s352, 8
        %s354 = scalar_lea.vmem %s0, %s353
        %p355 = pneg %p55
        %p356 = pneg %p52
        %s357 = sand.u32 %s68, 1
        %s358 = scalar_lea.sflag [#allocation7], %s357
        %s359 = sand.u32 %s68, 1
        %s360 = smul.addr %s359, 64
        %s361 = scalar_lea.vmem [#allocation6], %s360
        %p362 = pneg %p81
        %p363 = pneg %p78
        %p364 = pneg %p102
        %p365 = pneg %p99
        %s366 = sand.u32 %s115, 1
        %s367 = sand.u32 %s115, 1
        %s368 = smul.addr %s367, 128
        %s369 = scalar_lea.vmem [#allocation11], %s368
        %p370 = pneg %p128
        %p371 = pneg %p125
        %p372 = pneg %p154
        %p373 = pneg %p151
        %s374 = sand.u32 %s141, 1
        %s375 = scalar_lea.sflag [#allocation8], %s374
        %s376 = sand.u32 %s141, 1
        %s377 = smul.addr %s376, 8
        %s378 = scalar_lea.vmem [#allocation12], %s377
        %s379 = smul.u32 16, %s26
        %p380 = scmp.lt.s32.totalorder %s379, 31
        %s381 = scalar_select %p380, %s379, 31
        %s382 = smul.addr %s381, 8
        %s383 = scalar_lea.vmem %s0, %s382
        %s384 = smul.u32 16, %s26
        %s385 = smul.u32 16, %s26
        %s386 = smul.u32 2, %s27
        %p387 = scmp.eq.s32.totalorder %s27, 0
        // Predicated region
        $region83: #{tpu_custom_call.1} parent=69 // pred_check
          %p388 = pneg %p387
        $region84: #{tpu_custom_call.1} parent=69 // pred_check_branch
          %390 = sbr.rel (%p388) target = $region86
        $region85: #{tpu_custom_call.1} parent=69 // pred_region
          %v391 = vld [vmem:[%s332] sm:$0xf]
          %v392 = vld [vmem:[%s332 + $0x4] sm:$0xf]
          %v393 = vld [vmem:[%s332 + $0x8] sm:$0xf]
          %v394 = vld [vmem:[%s332 + $0xc] sm:$0xf]
          %v395 = vld [vmem:[%s332 + $0x10] sm:$0xf]
          %v396 = vld [vmem:[%s332 + $0x14] sm:$0xf]
          %v397 = vld [vmem:[%s332 + $0x18] sm:$0xf]
          %v398 = vld [vmem:[%s332 + $0x1c] sm:$0xf]
          %v399 = vld [vmem:[%s332 + $0x20] sm:$0xf]
          %v400 = vld [vmem:[%s332 + $0x24] sm:$0xf]
          %v401 = vld [vmem:[%s332 + $0x28] sm:$0xf]
          %v402 = vld [vmem:[%s332 + $0x2c] sm:$0xf]
          %v403 = vld [vmem:[%s332 + $0x30] sm:$0xf]
          %v404 = vld [vmem:[%s332 + $0x34] sm:$0xf]
          %v405 = vld [vmem:[%s332 + $0x38] sm:$0xf]
          %v406 = vld [vmem:[%s332 + $0x3c] sm:$0xf]
          %v407 = vld [vmem:[#allocation9] sm:$0xf]
          %v408 = vld [vmem:[#allocation9 + $0x4] sm:$0xf]
          %v409 = vld [vmem:[#allocation9 + $0x8] sm:$0xf]
          %v410 = vld [vmem:[#allocation9 + $0xc] sm:$0xf]
          %v411 = vld [vmem:[#allocation9 + $0x10] sm:$0xf]
          %v412 = vld [vmem:[#allocation9 + $0x14] sm:$0xf]
          %v413 = vld [vmem:[#allocation9 + $0x18] sm:$0xf]
          %v414 = vld [vmem:[#allocation9 + $0x1c] sm:$0xf]
          %v415 = vld [vmem:[#allocation9 + $0x20] sm:$0xf]
          %v416 = vld [vmem:[#allocation9 + $0x24] sm:$0xf]
          %v417 = vld [vmem:[#allocation9 + $0x28] sm:$0xf]
          %v418 = vld [vmem:[#allocation9 + $0x2c] sm:$0xf]
          %v419 = vld [vmem:[#allocation9 + $0x30] sm:$0xf]
          %v420 = vld [vmem:[#allocation9 + $0x34] sm:$0xf]
          %v421 = vld [vmem:[#allocation9 + $0x38] sm:$0xf]
          %v422 = vld [vmem:[#allocation9 + $0x3c] sm:$0xf]
          %v439 = vunpack.c.l.b16 %v391
          %v440 = vunpack.c.l.b16 %v392
          %v441 = vunpack.c.l.b16 %v393
          %v442 = vunpack.c.l.b16 %v394
          %v443 = vunpack.c.l.b16 %v395
          %v444 = vunpack.c.l.b16 %v396
          %v445 = vunpack.c.l.b16 %v397
          %v446 = vunpack.c.l.b16 %v398
          %v447 = vunpack.c.l.b16 %v399
          %v448 = vunpack.c.l.b16 %v400
          %v449 = vunpack.c.l.b16 %v401
          %v450 = vunpack.c.l.b16 %v402
          %v451 = vunpack.c.l.b16 %v403
          %v452 = vunpack.c.l.b16 %v404
          %v453 = vunpack.c.l.b16 %v405
          %v454 = vunpack.c.l.b16 %v406
          %v455 = vpack.c.b16 %v440, %v439
          %v456 = vpack.c.b16 %v442, %v441
          %v457 = vpack.c.b16 %v444, %v443
          %v458 = vpack.c.b16 %v446, %v445
          %v459 = vpack.c.b16 %v448, %v447
          %v460 = vpack.c.b16 %v450, %v449
          %v461 = vpack.c.b16 %v452, %v451
          %v462 = vpack.c.b16 %v454, %v453
          %v487 = vunpack.c.l.b16 %v407
          %v488 = vunpack.c.l.b16 %v408
          %v489 = vunpack.c.l.b16 %v409
          %v490 = vunpack.c.l.b16 %v410
          %v491 = vunpack.c.l.b16 %v411
          %v492 = vunpack.c.l.b16 %v412
          %v493 = vunpack.c.l.b16 %v413
          %v494 = vunpack.c.l.b16 %v414
          %v495 = vunpack.c.l.b16 %v415
          %v496 = vunpack.c.l.b16 %v416
          %v497 = vunpack.c.l.b16 %v417
          %v498 = vunpack.c.l.b16 %v418
          %v499 = vunpack.c.l.b16 %v419
          %v500 = vunpack.c.l.b16 %v420
          %v501 = vunpack.c.l.b16 %v421
          %v502 = vunpack.c.l.b16 %v422
          %v503 = vpack.c.b16 %v488, %v487
          %v504 = vpack.c.b16 %v490, %v489
          %v505 = vpack.c.b16 %v492, %v491
          %v506 = vpack.c.b16 %v494, %v493
          %v507 = vpack.c.b16 %v496, %v495
          %v508 = vpack.c.b16 %v498, %v497
          %v509 = vpack.c.b16 %v500, %v499
          %v510 = vpack.c.b16 %v502, %v501
          %519 = vmatpush.bf16.msra.mxu0 %v510
          %520 = vmatpush.bf16.msra.mxu0 %v509
          %521 = vmatpush.bf16.msra.mxu0 %v508
          %522 = vmatpush.bf16.msra.mxu0 %v507
          %523 = vmatpush.bf16.msra.mxu0 %v506
          %524 = vmatpush.bf16.msra.mxu0 %v505
          %525 = vmatpush.bf16.msra.mxu0 %v504
          %526 = vmatpush.bf16.msra.mxu0 %v503
          %527 = vmatmul.bf16.gmra.mxu0 %v455
          %v528 = vpop.f32.mrf.mxu0
          %v529 = vadd.f32 0.0, %v528
          %v530 = vpop.f32.mrf.mxu0
          %v531 = vadd.f32 0.0, %v530
          %532 = vmatmul.bf16.gmra.mxu0 %v456
          %v533 = vpop.f32.mrf.mxu0
          %v534 = vadd.f32 0.0, %v533
          %v535 = vpop.f32.mrf.mxu0
          %v536 = vadd.f32 0.0, %v535
          %537 = vmatmul.bf16.gmra.mxu0 %v457
          %v538 = vpop.f32.mrf.mxu0
          %v539 = vadd.f32 0.0, %v538
          %v540 = vpop.f32.mrf.mxu0
          %v541 = vadd.f32 0.0, %v540
          %542 = vmatmul.bf16.gmra.mxu0 %v458
          %v543 = vpop.f32.mrf.mxu0
          %v544 = vadd.f32 0.0, %v543
          %v545 = vpop.f32.mrf.mxu0
          %v546 = vadd.f32 0.0, %v545
          %547 = vmatmul.bf16.gmra.mxu0 %v459
          %v548 = vpop.f32.mrf.mxu0
          %v549 = vadd.f32 0.0, %v548
          %v550 = vpop.f32.mrf.mxu0
          %v551 = vadd.f32 0.0, %v550
          %552 = vmatmul.bf16.gmra.mxu0 %v460
          %v553 = vpop.f32.mrf.mxu0
          %v554 = vadd.f32 0.0, %v553
          %v555 = vpop.f32.mrf.mxu0
          %v556 = vadd.f32 0.0, %v555
          %557 = vmatmul.bf16.gmra.mxu0 %v461
          %v558 = vpop.f32.mrf.mxu0
          %v559 = vadd.f32 0.0, %v558
          %v560 = vpop.f32.mrf.mxu0
          %v561 = vadd.f32 0.0, %v560
          %562 = vmatmul.bf16.gmra.mxu0 %v462
          %v563 = vpop.f32.mrf.mxu0
          %v564 = vadd.f32 0.0, %v563
          %v565 = vpop.f32.mrf.mxu0
          %v566 = vadd.f32 0.0, %v565
          %567 = vdwg.mxu0
          %v568 = vtanh.pop %v529
          %v569 = vtanh.pop %v531
          %v570 = vtanh.pop %v534
          %v571 = vtanh.pop %v536
          %v572 = vtanh.pop %v539
          %v573 = vtanh.pop %v541
          %v574 = vtanh.pop %v544
          %v575 = vtanh.pop %v546
          %v576 = vtanh.pop %v549
          %v577 = vtanh.pop %v551
          %v578 = vtanh.pop %v554
          %v579 = vtanh.pop %v556
          %v580 = vtanh.pop %v559
          %v581 = vtanh.pop %v561
          %v582 = vtanh.pop %v564
          %v583 = vtanh.pop %v566
          %v584 = vpack.c.bf16 %v568, %v568
          %v585 = vpack.c.bf16 %v569, %v569
          %v586 = vpack.c.bf16 %v570, %v570
          %v587 = vpack.c.bf16 %v571, %v571
          %v588 = vpack.c.bf16 %v572, %v572
          %v589 = vpack.c.bf16 %v573, %v573
          %v590 = vpack.c.bf16 %v574, %v574
          %v591 = vpack.c.bf16 %v575, %v575
          %v592 = vpack.c.bf16 %v576, %v576
          %v593 = vpack.c.bf16 %v577, %v577
          %v594 = vpack.c.bf16 %v578, %v578
          %v595 = vpack.c.bf16 %v579, %v579
          %v596 = vpack.c.bf16 %v580, %v580
          %v597 = vpack.c.bf16 %v581, %v581
          %v598 = vpack.c.bf16 %v582, %v582
          %v599 = vpack.c.bf16 %v583, %v583
          %600 = vst [vmem:[#allocation2] sm:$0xf] %v584
          %601 = vst [vmem:[#allocation2 + $0x4] sm:$0xf] %v585
          %602 = vst [vmem:[#allocation2 + $0x8] sm:$0xf] %v586
          %603 = vst [vmem:[#allocation2 + $0xc] sm:$0xf] %v587
          %604 = vst [vmem:[#allocation2 + $0x10] sm:$0xf] %v588
          %605 = vst [vmem:[#allocation2 + $0x14] sm:$0xf] %v589
          %606 = vst [vmem:[#allocation2 + $0x18] sm:$0xf] %v590
          %607 = vst [vmem:[#allocation2 + $0x1c] sm:$0xf] %v591
          %608 = vst [vmem:[#allocation2 + $0x20] sm:$0xf] %v592
          %609 = vst [vmem:[#allocation2 + $0x24] sm:$0xf] %v593
          %610 = vst [vmem:[#allocation2 + $0x28] sm:$0xf] %v594
          %611 = vst [vmem:[#allocation2 + $0x2c] sm:$0xf] %v595
          %612 = vst [vmem:[#allocation2 + $0x30] sm:$0xf] %v596
          %613 = vst [vmem:[#allocation2 + $0x34] sm:$0xf] %v597
          %614 = vst [vmem:[#allocation2 + $0x38] sm:$0xf] %v598
          %615 = vst [vmem:[#allocation2 + $0x3c] sm:$0xf] %v599
          %vm616 = vcmask 7168
          %617 = vst.msk [vmem:[#allocation3] sm:$0xff] %vm616, -inf
          %618 = vst.msk [vmem:[#allocation3 + $0x8] sm:$0xff] %vm616, -inf
          %619 = vst.msk [vmem:[#allocation3 + $0x10] sm:$0xff] %vm616, -inf
          %620 = vst.msk [vmem:[#allocation3 + $0x18] sm:$0xff] %vm616, -inf
          %621 = vst.msk [vmem:[#allocation3 + $0x20] sm:$0xff] %vm616, -inf
          %622 = vst.msk [vmem:[#allocation3 + $0x28] sm:$0xff] %vm616, -inf
          %623 = vst.msk [vmem:[#allocation3 + $0x30] sm:$0xff] %vm616, -inf
          %624 = vst.msk [vmem:[#allocation3 + $0x38] sm:$0xff] %vm616, -inf
          %625 = vst.msk [vmem:[#allocation3 + $0x40] sm:$0xff] %vm616, -inf
          %626 = vst.msk [vmem:[#allocation3 + $0x48] sm:$0xff] %vm616, -inf
          %627 = vst.msk [vmem:[#allocation3 + $0x50] sm:$0xff] %vm616, -inf
          %628 = vst.msk [vmem:[#allocation3 + $0x58] sm:$0xff] %vm616, -inf
          %629 = vst.msk [vmem:[#allocation3 + $0x60] sm:$0xff] %vm616, -inf
          %630 = vst.msk [vmem:[#allocation3 + $0x68] sm:$0xff] %vm616, -inf
          %631 = vst.msk [vmem:[#allocation3 + $0x70] sm:$0xff] %vm616, -inf
          %632 = vst.msk [vmem:[#allocation3 + $0x78] sm:$0xff] %vm616, -inf
          %633 = vst.msk [vmem:[#allocation4] sm:$0xff] %vm616, 0.0
          %634 = vst.msk [vmem:[#allocation4 + $0x8] sm:$0xff] %vm616, 0.0
          %635 = vst.msk [vmem:[#allocation4 + $0x10] sm:$0xff] %vm616, 0.0
          %636 = vst.msk [vmem:[#allocation4 + $0x18] sm:$0xff] %vm616, 0.0
          %637 = vst.msk [vmem:[#allocation4 + $0x20] sm:$0xff] %vm616, 0.0
          %638 = vst.msk [vmem:[#allocation4 + $0x28] sm:$0xff] %vm616, 0.0
          %639 = vst.msk [vmem:[#allocation4 + $0x30] sm:$0xff] %vm616, 0.0
          %640 = vst.msk [vmem:[#allocation4 + $0x38] sm:$0xff] %vm616, 0.0
          %641 = vst.msk [vmem:[#allocation4 + $0x40] sm:$0xff] %vm616, 0.0
          %642 = vst.msk [vmem:[#allocation4 + $0x48] sm:$0xff] %vm616, 0.0
          %643 = vst.msk [vmem:[#allocation4 + $0x50] sm:$0xff] %vm616, 0.0
          %644 = vst.msk [vmem:[#allocation4 + $0x58] sm:$0xff] %vm616, 0.0
          %645 = vst.msk [vmem:[#allocation4 + $0x60] sm:$0xff] %vm616, 0.0
          %646 = vst.msk [vmem:[#allocation4 + $0x68] sm:$0xff] %vm616, 0.0
          %647 = vst.msk [vmem:[#allocation4 + $0x70] sm:$0xff] %vm616, 0.0
          %648 = vst.msk [vmem:[#allocation4 + $0x78] sm:$0xff] %vm616, 0.0
          %649 = vst.msk [vmem:[#allocation5] sm:$0xff] %vm616, 0.0
          %650 = vst.msk [vmem:[#allocation5 + $0x8] sm:$0xff] %vm616, 0.0
          %651 = vst.msk [vmem:[#allocation5 + $0x10] sm:$0xff] %vm616, 0.0
          %652 = vst.msk [vmem:[#allocation5 + $0x18] sm:$0xff] %vm616, 0.0
          %653 = vst.msk [vmem:[#allocation5 + $0x20] sm:$0xff] %vm616, 0.0
          %654 = vst.msk [vmem:[#allocation5 + $0x28] sm:$0xff] %vm616, 0.0
          %655 = vst.msk [vmem:[#allocation5 + $0x30] sm:$0xff] %vm616, 0.0
          %656 = vst.msk [vmem:[#allocation5 + $0x38] sm:$0xff] %vm616, 0.0
          %657 = vst.msk [vmem:[#allocation5 + $0x40] sm:$0xff] %vm616, 0.0
          %658 = vst.msk [vmem:[#allocation5 + $0x48] sm:$0xff] %vm616, 0.0
          %659 = vst.msk [vmem:[#allocation5 + $0x50] sm:$0xff] %vm616, 0.0
          %660 = vst.msk [vmem:[#allocation5 + $0x58] sm:$0xff] %vm616, 0.0
          %661 = vst.msk [vmem:[#allocation5 + $0x60] sm:$0xff] %vm616, 0.0
          %662 = vst.msk [vmem:[#allocation5 + $0x68] sm:$0xff] %vm616, 0.0
          %663 = vst.msk [vmem:[#allocation5 + $0x70] sm:$0xff] %vm616, 0.0
          %664 = vst.msk [vmem:[#allocation5 + $0x78] sm:$0xff] %vm616, 0.0
        $region86: #{tpu_custom_call.1} parent=69 // pred_fallthru
          _
        %v665 = vld [vmem:[#allocation2] sm:$0xf]
        %v666 = vld [vmem:[#allocation2 + $0x4] sm:$0xf]
        %v667 = vld [vmem:[#allocation2 + $0x8] sm:$0xf]
        %v668 = vld [vmem:[#allocation2 + $0xc] sm:$0xf]
        %v669 = vld [vmem:[#allocation2 + $0x10] sm:$0xf]
        %v670 = vld [vmem:[#allocation2 + $0x14] sm:$0xf]
        %v671 = vld [vmem:[#allocation2 + $0x18] sm:$0xf]
        %v672 = vld [vmem:[#allocation2 + $0x1c] sm:$0xf]
        %v673 = vld [vmem:[#allocation2 + $0x20] sm:$0xf]
        %v674 = vld [vmem:[#allocation2 + $0x24] sm:$0xf]
        %v675 = vld [vmem:[#allocation2 + $0x28] sm:$0xf]
        %v676 = vld [vmem:[#allocation2 + $0x2c] sm:$0xf]
        %v677 = vld [vmem:[#allocation2 + $0x30] sm:$0xf]
        %v678 = vld [vmem:[#allocation2 + $0x34] sm:$0xf]
        %v679 = vld [vmem:[#allocation2 + $0x38] sm:$0xf]
        %v680 = vld [vmem:[#allocation2 + $0x3c] sm:$0xf]
        %v681 = vld [vmem:[%s346] sm:$0xff]
        %v682 = vld [vmem:[%s346 + $0x8] sm:$0xff]
        %v683 = vld [vmem:[%s346 + $0x10] sm:$0xff]
        %v684 = vld [vmem:[%s346 + $0x18] sm:$0xff]
        %v685 = vld [vmem:[%s346 + $0x20] sm:$0xff]
        %v686 = vld [vmem:[%s346 + $0x28] sm:$0xff]
        %v687 = vld [vmem:[%s346 + $0x30] sm:$0xff]
        %v688 = vld [vmem:[%s346 + $0x38] sm:$0xff]
        %v689 = vld [vmem:[%s346 + $0x40] sm:$0xff]
        %v690 = vld [vmem:[%s346 + $0x48] sm:$0xff]
        %v691 = vld [vmem:[%s346 + $0x50] sm:$0xff]
        %v692 = vld [vmem:[%s346 + $0x58] sm:$0xff]
        %v693 = vld [vmem:[%s346 + $0x60] sm:$0xff]
        %v694 = vld [vmem:[%s346 + $0x68] sm:$0xff]
        %v695 = vld [vmem:[%s346 + $0x70] sm:$0xff]
        %v696 = vld [vmem:[%s346 + $0x78] sm:$0xff]
        %v713 = vunpack.c.l.b16 %v665
        %v714 = vunpack.c.l.b16 %v666
        %v715 = vunpack.c.l.b16 %v667
        %v716 = vunpack.c.l.b16 %v668
        %v717 = vunpack.c.l.b16 %v669
        %v718 = vunpack.c.l.b16 %v670
        %v719 = vunpack.c.l.b16 %v671
        %v720 = vunpack.c.l.b16 %v672
        %v721 = vunpack.c.l.b16 %v673
        %v722 = vunpack.c.l.b16 %v674
        %v723 = vunpack.c.l.b16 %v675
        %v724 = vunpack.c.l.b16 %v676
        %v725 = vunpack.c.l.b16 %v677
        %v726 = vunpack.c.l.b16 %v678
        %v727 = vunpack.c.l.b16 %v679
        %v728 = vunpack.c.l.b16 %v680
        %v729 = vpack.c.b16 %v714, %v713
        %v730 = vpack.c.b16 %v716, %v715
        %v731 = vpack.c.b16 %v718, %v717
        %v732 = vpack.c.b16 %v720, %v719
        %v733 = vpack.c.b16 %v722, %v721
        %v734 = vpack.c.b16 %v724, %v723
        %v735 = vpack.c.b16 %v726, %v725
        %v736 = vpack.c.b16 %v728, %v727
        %v761 = vunpack.c.l.b16 %v681
        %v762 = vunpack.c.h.b16 %v681
        %v763 = vunpack.c.l.b16 %v682
        %v764 = vunpack.c.h.b16 %v682
        %v765 = vunpack.c.l.b16 %v683
        %v766 = vunpack.c.h.b16 %v683
        %v767 = vunpack.c.l.b16 %v684
        %v768 = vunpack.c.h.b16 %v684
        %v769 = vunpack.c.l.b16 %v685
        %v770 = vunpack.c.h.b16 %v685
        %v771 = vunpack.c.l.b16 %v686
        %v772 = vunpack.c.h.b16 %v686
        %v773 = vunpack.c.l.b16 %v687
        %v774 = vunpack.c.h.b16 %v687
        %v775 = vunpack.c.l.b16 %v688
        %v776 = vunpack.c.h.b16 %v688
        %v777 = vunpack.c.l.b16 %v689
        %v778 = vunpack.c.h.b16 %v689
        %v779 = vunpack.c.l.b16 %v690
        %v780 = vunpack.c.h.b16 %v690
        %v781 = vunpack.c.l.b16 %v691
        %v782 = vunpack.c.h.b16 %v691
        %v783 = vunpack.c.l.b16 %v692
        %v784 = vunpack.c.h.b16 %v692
        %v785 = vunpack.c.l.b16 %v693
        %v786 = vunpack.c.h.b16 %v693
        %v787 = vunpack.c.l.b16 %v694
        %v788 = vunpack.c.h.b16 %v694
        %v789 = vunpack.c.l.b16 %v695
        %v790 = vunpack.c.h.b16 %v695
        %v791 = vunpack.c.l.b16 %v696
        %v792 = vunpack.c.h.b16 %v696
        %v793 = vpack.c.b16 %v763, %v761
        %v794 = vpack.c.b16 %v764, %v762
        %v795 = vpack.c.b16 %v767, %v765
        %v796 = vpack.c.b16 %v768, %v766
        %v797 = vpack.c.b16 %v771, %v769
        %v798 = vpack.c.b16 %v772, %v770
        %v799 = vpack.c.b16 %v775, %v773
        %v800 = vpack.c.b16 %v776, %v774
        %v801 = vpack.c.b16 %v779, %v777
        %v802 = vpack.c.b16 %v780, %v778
        %v803 = vpack.c.b16 %v783, %v781
        %v804 = vpack.c.b16 %v784, %v782
        %v805 = vpack.c.b16 %v787, %v785
        %v806 = vpack.c.b16 %v788, %v786
        %v807 = vpack.c.b16 %v791, %v789
        %v808 = vpack.c.b16 %v792, %v790
        %825 = vmatpush.bf16.msra.mxu0 %v807
        %826 = vmatpush.bf16.msra.mxu0 %v805
        %827 = vmatpush.bf16.msra.mxu0 %v803
        %828 = vmatpush.bf16.msra.mxu0 %v801
        %829 = vmatpush.bf16.msra.mxu0 %v799
        %830 = vmatpush.bf16.msra.mxu0 %v797
        %831 = vmatpush.bf16.msra.mxu0 %v795
        %832 = vmatpush.bf16.msra.mxu0 %v793
        %833 = vmatmul.bf16.gmra.mxu0 %v729
        %v834 = vpop.f32.mrf.mxu0
        %v835 = vadd.f32 0.0, %v834
        %v836 = vpop.f32.mrf.mxu0
        %v837 = vadd.f32 0.0, %v836
        %838 = vmatmul.bf16.gmra.mxu0 %v730
        %v839 = vpop.f32.mrf.mxu0
        %v840 = vadd.f32 0.0, %v839
        %v841 = vpop.f32.mrf.mxu0
        %v842 = vadd.f32 0.0, %v841
        %843 = vmatmul.bf16.gmra.mxu0 %v731
        %v844 = vpop.f32.mrf.mxu0
        %v845 = vadd.f32 0.0, %v844
        %v846 = vpop.f32.mrf.mxu0
        %v847 = vadd.f32 0.0, %v846
        %848 = vmatmul.bf16.gmra.mxu0 %v732
        %v849 = vpop.f32.mrf.mxu0
        %v850 = vadd.f32 0.0, %v849
        %v851 = vpop.f32.mrf.mxu0
        %v852 = vadd.f32 0.0, %v851
        %853 = vmatmul.bf16.gmra.mxu0 %v733
        %v854 = vpop.f32.mrf.mxu0
        %v855 = vadd.f32 0.0, %v854
        %v856 = vpop.f32.mrf.mxu0
        %v857 = vadd.f32 0.0, %v856
        %858 = vmatmul.bf16.gmra.mxu0 %v734
        %v859 = vpop.f32.mrf.mxu0
        %v860 = vadd.f32 0.0, %v859
        %v861 = vpop.f32.mrf.mxu0
        %v862 = vadd.f32 0.0, %v861
        %863 = vmatmul.bf16.gmra.mxu0 %v735
        %v864 = vpop.f32.mrf.mxu0
        %v865 = vadd.f32 0.0, %v864
        %v866 = vpop.f32.mrf.mxu0
        %v867 = vadd.f32 0.0, %v866
        %868 = vmatmul.bf16.gmra.mxu0 %v736
        %v869 = vpop.f32.mrf.mxu0
        %v870 = vadd.f32 0.0, %v869
        %v871 = vpop.f32.mrf.mxu0
        %v872 = vadd.f32 0.0, %v871
        %873 = vdwg.mxu0
        %874 = vmatpush.bf16.msra.mxu0 %v808
        %875 = vmatpush.bf16.msra.mxu0 %v806
        %876 = vmatpush.bf16.msra.mxu0 %v804
        %877 = vmatpush.bf16.msra.mxu0 %v802
        %878 = vmatpush.bf16.msra.mxu0 %v800
        %879 = vmatpush.bf16.msra.mxu0 %v798
        %880 = vmatpush.bf16.msra.mxu0 %v796
        %881 = vmatpush.bf16.msra.mxu0 %v794
        %882 = vmatmul.bf16.gmra.mxu0 %v729
        %v883 = vpop.f32.mrf.mxu0
        %v884 = vadd.f32 0.0, %v883
        %v885 = vpop.f32.mrf.mxu0
        %v886 = vadd.f32 0.0, %v885
        %887 = vmatmul.bf16.gmra.mxu0 %v730
        %v888 = vpop.f32.mrf.mxu0
        %v889 = vadd.f32 0.0, %v888
        %v890 = vpop.f32.mrf.mxu0
        %v891 = vadd.f32 0.0, %v890
        %892 = vmatmul.bf16.gmra.mxu0 %v731
        %v893 = vpop.f32.mrf.mxu0
        %v894 = vadd.f32 0.0, %v893
        %v895 = vpop.f32.mrf.mxu0
        %v896 = vadd.f32 0.0, %v895
        %897 = vmatmul.bf16.gmra.mxu0 %v732
        %v898 = vpop.f32.mrf.mxu0
        %v899 = vadd.f32 0.0, %v898
        %v900 = vpop.f32.mrf.mxu0
        %v901 = vadd.f32 0.0, %v900
        %902 = vmatmul.bf16.gmra.mxu0 %v733
        %v903 = vpop.f32.mrf.mxu0
        %v904 = vadd.f32 0.0, %v903
        %v905 = vpop.f32.mrf.mxu0
        %v906 = vadd.f32 0.0, %v905
        %907 = vmatmul.bf16.gmra.mxu0 %v734
        %v908 = vpop.f32.mrf.mxu0
        %v909 = vadd.f32 0.0, %v908
        %v910 = vpop.f32.mrf.mxu0
        %v911 = vadd.f32 0.0, %v910
        %912 = vmatmul.bf16.gmra.mxu0 %v735
        %v913 = vpop.f32.mrf.mxu0
        %v914 = vadd.f32 0.0, %v913
        %v915 = vpop.f32.mrf.mxu0
        %v916 = vadd.f32 0.0, %v915
        %917 = vmatmul.bf16.gmra.mxu0 %v736
        %v918 = vpop.f32.mrf.mxu0
        %v919 = vadd.f32 0.0, %v918
        %v920 = vpop.f32.mrf.mxu0
        %v921 = vadd.f32 0.0, %v920
        %922 = vdwg.mxu0
        %v923 = vld [vmem:[#allocation3] sm:$0xff]
        %v924 = vld [vmem:[#allocation3 + $0x8] sm:$0xff]
        %v925 = vld [vmem:[#allocation3 + $0x10] sm:$0xff]
        %v926 = vld [vmem:[#allocation3 + $0x18] sm:$0xff]
        %v927 = vld [vmem:[#allocation3 + $0x20] sm:$0xff]
        %v928 = vld [vmem:[#allocation3 + $0x28] sm:$0xff]
        %v929 = vld [vmem:[#allocation3 + $0x30] sm:$0xff]
        %v930 = vld [vmem:[#allocation3 + $0x38] sm:$0xff]
        %v931 = vld [vmem:[#allocation3 + $0x40] sm:$0xff]
        %v932 = vld [vmem:[#allocation3 + $0x48] sm:$0xff]
        %v933 = vld [vmem:[#allocation3 + $0x50] sm:$0xff]
        %v934 = vld [vmem:[#allocation3 + $0x58] sm:$0xff]
        %v935 = vld [vmem:[#allocation3 + $0x60] sm:$0xff]
        %v936 = vld [vmem:[#allocation3 + $0x68] sm:$0xff]
        %v937 = vld [vmem:[#allocation3 + $0x70] sm:$0xff]
        %v938 = vld [vmem:[#allocation3 + $0x78] sm:$0xff]
        %v939 = vmax.f32 %v835, %v884
        %940 = vmax.xlane.f32.xlu0 %v939
        %v941 = vpop.xlane.xlu0 %940
        %v942 = vmax.f32 %v837, %v886
        %943 = vmax.xlane.f32.xlu0 %v942
        %v944 = vpop.xlane.xlu0 %943
        %v945 = vmax.f32 %v840, %v889
        %946 = vmax.xlane.f32.xlu0 %v945
        %v947 = vpop.xlane.xlu0 %946
        %v948 = vmax.f32 %v842, %v891
        %949 = vmax.xlane.f32.xlu0 %v948
        %v950 = vpop.xlane.xlu0 %949
        %v951 = vmax.f32 %v845, %v894
        %952 = vmax.xlane.f32.xlu0 %v951
        %v953 = vpop.xlane.xlu0 %952
        %v954 = vmax.f32 %v847, %v896
        %955 = vmax.xlane.f32.xlu0 %v954
        %v956 = vpop.xlane.xlu0 %955
        %v957 = vmax.f32 %v850, %v899
        %958 = vmax.xlane.f32.xlu0 %v957
        %v959 = vpop.xlane.xlu0 %958
        %v960 = vmax.f32 %v852, %v901
        %961 = vmax.xlane.f32.xlu0 %v960
        %v962 = vpop.xlane.xlu0 %961
        %v963 = vmax.f32 %v855, %v904
        %964 = vmax.xlane.f32.xlu0 %v963
        %v965 = vpop.xlane.xlu0 %964
        %v966 = vmax.f32 %v857, %v906
        %967 = vmax.xlane.f32.xlu0 %v966
        %v968 = vpop.xlane.xlu0 %967
        %v969 = vmax.f32 %v860, %v909
        %970 = vmax.xlane.f32.xlu0 %v969
        %v971 = vpop.xlane.xlu0 %970
        %v972 = vmax.f32 %v862, %v911
        %973 = vmax.xlane.f32.xlu0 %v972
        %v974 = vpop.xlane.xlu0 %973
        %v975 = vmax.f32 %v865, %v914
        %976 = vmax.xlane.f32.xlu0 %v975
        %v977 = vpop.xlane.xlu0 %976
        %v978 = vmax.f32 %v867, %v916
        %979 = vmax.xlane.f32.xlu0 %v978
        %v980 = vpop.xlane.xlu0 %979
        %v981 = vmax.f32 %v870, %v919
        %982 = vmax.xlane.f32.xlu0 %v981
        %v983 = vpop.xlane.xlu0 %982
        %v984 = vmax.f32 %v872, %v921
        %985 = vmax.xlane.f32.xlu0 %v984
        %v986 = vpop.xlane.xlu0 %985
        %v987 = vmax.f32 %v923, %v941
        %v988 = vmax.f32 %v924, %v944
        %v989 = vmax.f32 %v925, %v947
        %v990 = vmax.f32 %v926, %v950
        %v991 = vmax.f32 %v927, %v953
        %v992 = vmax.f32 %v928, %v956
        %v993 = vmax.f32 %v929, %v959
        %v994 = vmax.f32 %v930, %v962
        %v995 = vmax.f32 %v931, %v965
        %v996 = vmax.f32 %v932, %v968
        %v997 = vmax.f32 %v933, %v971
        %v998 = vmax.f32 %v934, %v974
        %v999 = vmax.f32 %v935, %v977
        %v1000 = vmax.f32 %v936, %v980
        %v1001 = vmax.f32 %v937, %v983
        %v1002 = vmax.f32 %v938, %v986
        %v1003 = vsub.f32 %v923, %v987
        %v1004 = vsub.f32 %v924, %v988
        %v1005 = vsub.f32 %v925, %v989
        %v1006 = vsub.f32 %v926, %v990
        %v1007 = vsub.f32 %v927, %v991
        %v1008 = vsub.f32 %v928, %v992
        %v1009 = vsub.f32 %v929, %v993
        %v1010 = vsub.f32 %v930, %v994
        %v1011 = vsub.f32 %v931, %v995
        %v1012 = vsub.f32 %v932, %v996
        %v1013 = vsub.f32 %v933, %v997
        %v1014 = vsub.f32 %v934, %v998
        %v1015 = vsub.f32 %v935, %v999
        %v1016 = vsub.f32 %v936, %v1000
        %v1017 = vsub.f32 %v937, %v1001
        %v1018 = vsub.f32 %v938, %v1002
        %v1019 = vmul.f32 %v1003, 1.442695
        %v1020 = vpow.pop %v1019
        %v1021 = vmul.f32 %v1004, 1.442695
        %v1022 = vpow.pop %v1021
        %v1023 = vmul.f32 %v1005, 1.442695
        %v1024 = vpow.pop %v1023
        %v1025 = vmul.f32 %v1006, 1.442695
        %v1026 = vpow.pop %v1025
        %v1027 = vmul.f32 %v1007, 1.442695
        %v1028 = vpow.pop %v1027
        %v1029 = vmul.f32 %v1008, 1.442695
        %v1030 = vpow.pop %v1029
        %v1031 = vmul.f32 %v1009, 1.442695
        %v1032 = vpow.pop %v1031
        %v1033 = vmul.f32 %v1010, 1.442695
        %v1034 = vpow.pop %v1033
        %v1035 = vmul.f32 %v1011, 1.442695
        %v1036 = vpow.pop %v1035
        %v1037 = vmul.f32 %v1012, 1.442695
        %v1038 = vpow.pop %v1037
        %v1039 = vmul.f32 %v1013, 1.442695
        %v1040 = vpow.pop %v1039
        %v1041 = vmul.f32 %v1014, 1.442695
        %v1042 = vpow.pop %v1041
        %v1043 = vmul.f32 %v1015, 1.442695
        %v1044 = vpow.pop %v1043
        %v1045 = vmul.f32 %v1016, 1.442695
        %v1046 = vpow.pop %v1045
        %v1047 = vmul.f32 %v1017, 1.442695
        %v1048 = vpow.pop %v1047
        %v1049 = vmul.f32 %v1018, 1.442695
        %v1050 = vpow.pop %v1049
        %1052 = vset.pattern.permute.xlu0 0
        %1053 = vperm.xlu0 %1052, %v987
        %v1054 = vpop.permute.xlu0 %1053
        %1057 = vset.pattern.permute.xlu0 0
        %1058 = vperm.xlu0 %1057, %v988
        %v1059 = vpop.permute.xlu0 %1058
        %1062 = vset.pattern.permute.xlu0 0
        %1063 = vperm.xlu0 %1062, %v989
        %v1064 = vpop.permute.xlu0 %1063
        %1067 = vset.pattern.permute.xlu0 0
        %1068 = vperm.xlu0 %1067, %v990
        %v1069 = vpop.permute.xlu0 %1068
        %1072 = vset.pattern.permute.xlu0 0
        %1073 = vperm.xlu0 %1072, %v991
        %v1074 = vpop.permute.xlu0 %1073
        %1077 = vset.pattern.permute.xlu0 0
        %1078 = vperm.xlu0 %1077, %v992
        %v1079 = vpop.permute.xlu0 %1078
        %1082 = vset.pattern.permute.xlu0 0
        %1083 = vperm.xlu0 %1082, %v993
        %v1084 = vpop.permute.xlu0 %1083
        %1087 = vset.pattern.permute.xlu0 0
        %1088 = vperm.xlu0 %1087, %v994
        %v1089 = vpop.permute.xlu0 %1088
        %1092 = vset.pattern.permute.xlu0 0
        %1093 = vperm.xlu0 %1092, %v995
        %v1094 = vpop.permute.xlu0 %1093
        %1097 = vset.pattern.permute.xlu0 0
        %1098 = vperm.xlu0 %1097, %v996
        %v1099 = vpop.permute.xlu0 %1098
        %1102 = vset.pattern.permute.xlu0 0
        %1103 = vperm.xlu0 %1102, %v997
        %v1104 = vpop.permute.xlu0 %1103
        %1107 = vset.pattern.permute.xlu0 0
        %1108 = vperm.xlu0 %1107, %v998
        %v1109 = vpop.permute.xlu0 %1108
        %1112 = vset.pattern.permute.xlu0 0
        %1113 = vperm.xlu0 %1112, %v999
        %v1114 = vpop.permute.xlu0 %1113
        %1117 = vset.pattern.permute.xlu0 0
        %1118 = vperm.xlu0 %1117, %v1000
        %v1119 = vpop.permute.xlu0 %1118
        %1122 = vset.pattern.permute.xlu0 0
        %1123 = vperm.xlu0 %1122, %v1001
        %v1124 = vpop.permute.xlu0 %1123
        %1127 = vset.pattern.permute.xlu0 0
        %1128 = vperm.xlu0 %1127, %v1002
        %v1129 = vpop.permute.xlu0 %1128
        %v1131 = vsub.f32 %v835, %v1054
        %v1132 = vsub.f32 %v884, %v1054
        %v1133 = vsub.f32 %v837, %v1059
        %v1134 = vsub.f32 %v886, %v1059
        %v1135 = vsub.f32 %v840, %v1064
        %v1136 = vsub.f32 %v889, %v1064
        %v1137 = vsub.f32 %v842, %v1069
        %v1138 = vsub.f32 %v891, %v1069
        %v1139 = vsub.f32 %v845, %v1074
        %v1140 = vsub.f32 %v894, %v1074
        %v1141 = vsub.f32 %v847, %v1079
        %v1142 = vsub.f32 %v896, %v1079
        %v1143 = vsub.f32 %v850, %v1084
        %v1144 = vsub.f32 %v899, %v1084
        %v1145 = vsub.f32 %v852, %v1089
        %v1146 = vsub.f32 %v901, %v1089
        %v1147 = vsub.f32 %v855, %v1094
        %v1148 = vsub.f32 %v904, %v1094
        %v1149 = vsub.f32 %v857, %v1099
        %v1150 = vsub.f32 %v906, %v1099
        %v1151 = vsub.f32 %v860, %v1104
        %v1152 = vsub.f32 %v909, %v1104
        %v1153 = vsub.f32 %v862, %v1109
        %v1154 = vsub.f32 %v911, %v1109
        %v1155 = vsub.f32 %v865, %v1114
        %v1156 = vsub.f32 %v914, %v1114
        %v1157 = vsub.f32 %v867, %v1119
        %v1158 = vsub.f32 %v916, %v1119
        %v1159 = vsub.f32 %v870, %v1124
        %v1160 = vsub.f32 %v919, %v1124
        %v1161 = vsub.f32 %v872, %v1129
        %v1162 = vsub.f32 %v921, %v1129
        %v1163 = vmul.f32 %v1131, 1.442695
        %v1164 = vpow.pop %v1163
        %v1165 = vmul.f32 %v1132, 1.442695
        %v1166 = vpow.pop %v1165
        %v1167 = vmul.f32 %v1133, 1.442695
        %v1168 = vpow.pop %v1167
        %v1169 = vmul.f32 %v1134, 1.442695
        %v1170 = vpow.pop %v1169
        %v1171 = vmul.f32 %v1135, 1.442695
        %v1172 = vpow.pop %v1171
        %v1173 = vmul.f32 %v1136, 1.442695
        %v1174 = vpow.pop %v1173
        %v1175 = vmul.f32 %v1137, 1.442695
        %v1176 = vpow.pop %v1175
        %v1177 = vmul.f32 %v1138, 1.442695
        %v1178 = vpow.pop %v1177
        %v1179 = vmul.f32 %v1139, 1.442695
        %v1180 = vpow.pop %v1179
        %v1181 = vmul.f32 %v1140, 1.442695
        %v1182 = vpow.pop %v1181
        %v1183 = vmul.f32 %v1141, 1.442695
        %v1184 = vpow.pop %v1183
        %v1185 = vmul.f32 %v1142, 1.442695
        %v1186 = vpow.pop %v1185
        %v1187 = vmul.f32 %v1143, 1.442695
        %v1188 = vpow.pop %v1187
        %v1189 = vmul.f32 %v1144, 1.442695
        %v1190 = vpow.pop %v1189
        %v1191 = vmul.f32 %v1145, 1.442695
        %v1192 = vpow.pop %v1191
        %v1193 = vmul.f32 %v1146, 1.442695
        %v1194 = vpow.pop %v1193
        %v1195 = vmul.f32 %v1147, 1.442695
        %v1196 = vpow.pop %v1195
        %v1197 = vmul.f32 %v1148, 1.442695
        %v1198 = vpow.pop %v1197
        %v1199 = vmul.f32 %v1149, 1.442695
        %v1200 = vpow.pop %v1199
        %v1201 = vmul.f32 %v1150, 1.442695
        %v1202 = vpow.pop %v1201
        %v1203 = vmul.f32 %v1151, 1.442695
        %v1204 = vpow.pop %v1203
        %v1205 = vmul.f32 %v1152, 1.442695
        %v1206 = vpow.pop %v1205
        %v1207 = vmul.f32 %v1153, 1.442695
        %v1208 = vpow.pop %v1207
        %v1209 = vmul.f32 %v1154, 1.442695
        %v1210 = vpow.pop %v1209
        %v1211 = vmul.f32 %v1155, 1.442695
        %v1212 = vpow.pop %v1211
        %v1213 = vmul.f32 %v1156, 1.442695
        %v1214 = vpow.pop %v1213
        %v1215 = vmul.f32 %v1157, 1.442695
        %v1216 = vpow.pop %v1215
        %v1217 = vmul.f32 %v1158, 1.442695
        %v1218 = vpow.pop %v1217
        %v1219 = vmul.f32 %v1159, 1.442695
        %v1220 = vpow.pop %v1219
        %v1221 = vmul.f32 %v1160, 1.442695
        %v1222 = vpow.pop %v1221
        %v1223 = vmul.f32 %v1161, 1.442695
        %v1224 = vpow.pop %v1223
        %v1225 = vmul.f32 %v1162, 1.442695
        %v1226 = vpow.pop %v1225
        %v1227 = vld [vmem:[#allocation4] sm:$0xff]
        %v1228 = vld [vmem:[#allocation4 + $0x8] sm:$0xff]
        %v1229 = vld [vmem:[#allocation4 + $0x10] sm:$0xff]
        %v1230 = vld [vmem:[#allocation4 + $0x18] sm:$0xff]
        %v1231 = vld [vmem:[#allocation4 + $0x20] sm:$0xff]
        %v1232 = vld [vmem:[#allocation4 + $0x28] sm:$0xff]
        %v1233 = vld [vmem:[#allocation4 + $0x30] sm:$0xff]
        %v1234 = vld [vmem:[#allocation4 + $0x38] sm:$0xff]
        %v1235 = vld [vmem:[#allocation4 + $0x40] sm:$0xff]
        %v1236 = vld [vmem:[#allocation4 + $0x48] sm:$0xff]
        %v1237 = vld [vmem:[#allocation4 + $0x50] sm:$0xff]
        %v1238 = vld [vmem:[#allocation4 + $0x58] sm:$0xff]
        %v1239 = vld [vmem:[#allocation4 + $0x60] sm:$0xff]
        %v1240 = vld [vmem:[#allocation4 + $0x68] sm:$0xff]
        %v1241 = vld [vmem:[#allocation4 + $0x70] sm:$0xff]
        %v1242 = vld [vmem:[#allocation4 + $0x78] sm:$0xff]
        %v1243 = vmul.f32 %v1020, %v1227
        %v1244 = vmul.f32 %v1022, %v1228
        %v1245 = vmul.f32 %v1024, %v1229
        %v1246 = vmul.f32 %v1026, %v1230
        %v1247 = vmul.f32 %v1028, %v1231
        %v1248 = vmul.f32 %v1030, %v1232
        %v1249 = vmul.f32 %v1032, %v1233
        %v1250 = vmul.f32 %v1034, %v1234
        %v1251 = vmul.f32 %v1036, %v1235
        %v1252 = vmul.f32 %v1038, %v1236
        %v1253 = vmul.f32 %v1040, %v1237
        %v1254 = vmul.f32 %v1042, %v1238
        %v1255 = vmul.f32 %v1044, %v1239
        %v1256 = vmul.f32 %v1046, %v1240
        %v1257 = vmul.f32 %v1048, %v1241
        %v1258 = vmul.f32 %v1050, %v1242
        %v1259 = vadd.f32 %v1164, %v1166
        %1260 = vadd.xlane.f32.xlu0 %v1259
        %v1261 = vpop.xlane.xlu0 %1260
        %v1262 = vadd.f32 %v1168, %v1170
        %1263 = vadd.xlane.f32.xlu0 %v1262
        %v1264 = vpop.xlane.xlu0 %1263
        %v1265 = vadd.f32 %v1172, %v1174
        %1266 = vadd.xlane.f32.xlu0 %v1265
        %v1267 = vpop.xlane.xlu0 %1266
        %v1268 = vadd.f32 %v1176, %v1178
        %1269 = vadd.xlane.f32.xlu0 %v1268
        %v1270 = vpop.xlane.xlu0 %1269
        %v1271 = vadd.f32 %v1180, %v1182
        %1272 = vadd.xlane.f32.xlu0 %v1271
        %v1273 = vpop.xlane.xlu0 %1272
        %v1274 = vadd.f32 %v1184, %v1186
        %1275 = vadd.xlane.f32.xlu0 %v1274
        %v1276 = vpop.xlane.xlu0 %1275
        %v1277 = vadd.f32 %v1188, %v1190
        %1278 = vadd.xlane.f32.xlu0 %v1277
        %v1279 = vpop.xlane.xlu0 %1278
        %v1280 = vadd.f32 %v1192, %v1194
        %1281 = vadd.xlane.f32.xlu0 %v1280
        %v1282 = vpop.xlane.xlu0 %1281
        %v1283 = vadd.f32 %v1196, %v1198
        %1284 = vadd.xlane.f32.xlu0 %v1283
        %v1285 = vpop.xlane.xlu0 %1284
        %v1286 = vadd.f32 %v1200, %v1202
        %1287 = vadd.xlane.f32.xlu0 %v1286
        %v1288 = vpop.xlane.xlu0 %1287
        %v1289 = vadd.f32 %v1204, %v1206
        %1290 = vadd.xlane.f32.xlu0 %v1289
        %v1291 = vpop.xlane.xlu0 %1290
        %v1292 = vadd.f32 %v1208, %v1210
        %1293 = vadd.xlane.f32.xlu0 %v1292
        %v1294 = vpop.xlane.xlu0 %1293
        %v1295 = vadd.f32 %v1212, %v1214
        %1296 = vadd.xlane.f32.xlu0 %v1295
        %v1297 = vpop.xlane.xlu0 %1296
        %v1298 = vadd.f32 %v1216, %v1218
        %1299 = vadd.xlane.f32.xlu0 %v1298
        %v1300 = vpop.xlane.xlu0 %1299
        %v1301 = vadd.f32 %v1220, %v1222
        %1302 = vadd.xlane.f32.xlu0 %v1301
        %v1303 = vpop.xlane.xlu0 %1302
        %v1304 = vadd.f32 %v1224, %v1226
        %1305 = vadd.xlane.f32.xlu0 %v1304
        %v1306 = vpop.xlane.xlu0 %1305
        %v1307 = vadd.f32 %v1243, %v1261
        %v1308 = vadd.f32 %v1244, %v1264
        %v1309 = vadd.f32 %v1245, %v1267
        %v1310 = vadd.f32 %v1246, %v1270
        %v1311 = vadd.f32 %v1247, %v1273
        %v1312 = vadd.f32 %v1248, %v1276
        %v1313 = vadd.f32 %v1249, %v1279
        %v1314 = vadd.f32 %v1250, %v1282
        %v1315 = vadd.f32 %v1251, %v1285
        %v1316 = vadd.f32 %v1252, %v1288
        %v1317 = vadd.f32 %v1253, %v1291
        %v1318 = vadd.f32 %v1254, %v1294
        %v1319 = vadd.f32 %v1255, %v1297
        %v1320 = vadd.f32 %v1256, %v1300
        %v1321 = vadd.f32 %v1257, %v1303
        %v1322 = vadd.f32 %v1258, %v1306
        %vm1323 = vcmask 7168
        %1324 = vst.msk [vmem:[#allocation4] sm:$0xff] %vm1323, %v1307
        %1325 = vst.msk [vmem:[#allocation4 + $0x8] sm:$0xff] %vm1323, %v1308
        %1326 = vst.msk [vmem:[#allocation4 + $0x10] sm:$0xff] %vm1323, %v1309
        %1327 = vst.msk [vmem:[#allocation4 + $0x18] sm:$0xff] %vm1323, %v1310
        %1328 = vst.msk [vmem:[#allocation4 + $0x20] sm:$0xff] %vm1323, %v1311
        %1329 = vst.msk [vmem:[#allocation4 + $0x28] sm:$0xff] %vm1323, %v1312
        %1330 = vst.msk [vmem:[#allocation4 + $0x30] sm:$0xff] %vm1323, %v1313
        %1331 = vst.msk [vmem:[#allocation4 + $0x38] sm:$0xff] %vm1323, %v1314
        %1332 = vst.msk [vmem:[#allocation4 + $0x40] sm:$0xff] %vm1323, %v1315
        %1333 = vst.msk [vmem:[#allocation4 + $0x48] sm:$0xff] %vm1323, %v1316
        %1334 = vst.msk [vmem:[#allocation4 + $0x50] sm:$0xff] %vm1323, %v1317
        %1335 = vst.msk [vmem:[#allocation4 + $0x58] sm:$0xff] %vm1323, %v1318
        %1336 = vst.msk [vmem:[#allocation4 + $0x60] sm:$0xff] %vm1323, %v1319
        %1337 = vst.msk [vmem:[#allocation4 + $0x68] sm:$0xff] %vm1323, %v1320
        %1338 = vst.msk [vmem:[#allocation4 + $0x70] sm:$0xff] %vm1323, %v1321
        %1339 = vst.msk [vmem:[#allocation4 + $0x78] sm:$0xff] %vm1323, %v1322
        %1340 = vst.msk [vmem:[#allocation3] sm:$0xff] %vm1323, %v987
        %1341 = vst.msk [vmem:[#allocation3 + $0x8] sm:$0xff] %vm1323, %v988
        %1342 = vst.msk [vmem:[#allocation3 + $0x10] sm:$0xff] %vm1323, %v989
        %1343 = vst.msk [vmem:[#allocation3 + $0x18] sm:$0xff] %vm1323, %v990
        %1344 = vst.msk [vmem:[#allocation3 + $0x20] sm:$0xff] %vm1323, %v991
        %1345 = vst.msk [vmem:[#allocation3 + $0x28] sm:$0xff] %vm1323, %v992
        %1346 = vst.msk [vmem:[#allocation3 + $0x30] sm:$0xff] %vm1323, %v993
        %1347 = vst.msk [vmem:[#allocation3 + $0x38] sm:$0xff] %vm1323, %v994
        %1348 = vst.msk [vmem:[#allocation3 + $0x40] sm:$0xff] %vm1323, %v995
        %1349 = vst.msk [vmem:[#allocation3 + $0x48] sm:$0xff] %vm1323, %v996
        %1350 = vst.msk [vmem:[#allocation3 + $0x50] sm:$0xff] %vm1323, %v997
        %1351 = vst.msk [vmem:[#allocation3 + $0x58] sm:$0xff] %vm1323, %v998
        %1352 = vst.msk [vmem:[#allocation3 + $0x60] sm:$0xff] %vm1323, %v999
        %1353 = vst.msk [vmem:[#allocation3 + $0x68] sm:$0xff] %vm1323, %v1000
        %1354 = vst.msk [vmem:[#allocation3 + $0x70] sm:$0xff] %vm1323, %v1001
        %1355 = vst.msk [vmem:[#allocation3 + $0x78] sm:$0xff] %vm1323, %v1002
        %v1356 = vld [vmem:[%s383] sm:$0xff]
        %v1357 = vld [vmem:[%s383 + $0x8] sm:$0xff]
        %v1358 = vld [vmem:[%s383 + $0x10] sm:$0xff]
        %v1359 = vld [vmem:[%s383 + $0x18] sm:$0xff]
        %v1360 = vld [vmem:[%s383 + $0x20] sm:$0xff]
        %v1361 = vld [vmem:[%s383 + $0x28] sm:$0xff]
        %v1362 = vld [vmem:[%s383 + $0x30] sm:$0xff]
        %v1363 = vld [vmem:[%s383 + $0x38] sm:$0xff]
        %v1364 = vld [vmem:[%s383 + $0x40] sm:$0xff]
        %v1365 = vld [vmem:[%s383 + $0x48] sm:$0xff]
        %v1366 = vld [vmem:[%s383 + $0x50] sm:$0xff]
        %v1367 = vld [vmem:[%s383 + $0x58] sm:$0xff]
        %v1368 = vld [vmem:[%s383 + $0x60] sm:$0xff]
        %v1369 = vld [vmem:[%s383 + $0x68] sm:$0xff]
        %v1370 = vld [vmem:[%s383 + $0x70] sm:$0xff]
        %v1371 = vld [vmem:[%s383 + $0x78] sm:$0xff]
        %s1372 = smul.u32 %s27, 256
        %v1373 = vlaneseq
        %v1374 = vand.u32 %v1373, 127
        %v1375 = vadd.s32 %v1374, 128
        %v1376 = vstv %s1372
        %v1377 = vadd.s32 %v1376, %v1374
        %v1378 = vadd.s32 %v1376, %v1375
        %v1379 = vld [vmem:[#allocation5] sm:$0xff]
        %v1380 = vld [vmem:[#allocation5 + $0x8] sm:$0xff]
        %v1381 = vld [vmem:[#allocation5 + $0x10] sm:$0xff]
        %v1382 = vld [vmem:[#allocation5 + $0x18] sm:$0xff]
        %v1383 = vld [vmem:[#allocation5 + $0x20] sm:$0xff]
        %v1384 = vld [vmem:[#allocation5 + $0x28] sm:$0xff]
        %v1385 = vld [vmem:[#allocation5 + $0x30] sm:$0xff]
        %v1386 = vld [vmem:[#allocation5 + $0x38] sm:$0xff]
        %v1387 = vld [vmem:[#allocation5 + $0x40] sm:$0xff]
        %v1388 = vld [vmem:[#allocation5 + $0x48] sm:$0xff]
        %v1389 = vld [vmem:[#allocation5 + $0x50] sm:$0xff]
        %v1390 = vld [vmem:[#allocation5 + $0x58] sm:$0xff]
        %v1391 = vld [vmem:[#allocation5 + $0x60] sm:$0xff]
        %v1392 = vld [vmem:[#allocation5 + $0x68] sm:$0xff]
        %v1393 = vld [vmem:[#allocation5 + $0x70] sm:$0xff]
        %v1394 = vld [vmem:[#allocation5 + $0x78] sm:$0xff]
        %1395 = vset.pattern.permute.xlu0 0
        %1396 = vperm.xlu0 %1395, %v1356
        %v1397 = vpop.permute.xlu0 %1396
        %1398 = vset.pattern.permute.xlu0 0
        %1399 = vperm.xlu0 %1398, %v1357
        %v1400 = vpop.permute.xlu0 %1399
        %1401 = vset.pattern.permute.xlu0 0
        %1402 = vperm.xlu0 %1401, %v1358
        %v1403 = vpop.permute.xlu0 %1402
        %1404 = vset.pattern.permute.xlu0 0
        %1405 = vperm.xlu0 %1404, %v1359
        %v1406 = vpop.permute.xlu0 %1405
        %1407 = vset.pattern.permute.xlu0 0
        %1408 = vperm.xlu0 %1407, %v1360
        %v1409 = vpop.permute.xlu0 %1408
        %1410 = vset.pattern.permute.xlu0 0
        %1411 = vperm.xlu0 %1410, %v1361
        %v1412 = vpop.permute.xlu0 %1411
        %1413 = vset.pattern.permute.xlu0 0
        %1414 = vperm.xlu0 %1413, %v1362
        %v1415 = vpop.permute.xlu0 %1414
        %1416 = vset.pattern.permute.xlu0 0
        %1417 = vperm.xlu0 %1416, %v1363
        %v1418 = vpop.permute.xlu0 %1417
        %1419 = vset.pattern.permute.xlu0 0
        %1420 = vperm.xlu0 %1419, %v1364
        %v1421 = vpop.permute.xlu0 %1420
        %1422 = vset.pattern.permute.xlu0 0
        %1423 = vperm.xlu0 %1422, %v1365
        %v1424 = vpop.permute.xlu0 %1423
        %1425 = vset.pattern.permute.xlu0 0
        %1426 = vperm.xlu0 %1425, %v1366
        %v1427 = vpop.permute.xlu0 %1426
        %1428 = vset.pattern.permute.xlu0 0
        %1429 = vperm.xlu0 %1428, %v1367
        %v1430 = vpop.permute.xlu0 %1429
        %1431 = vset.pattern.permute.xlu0 0
        %1432 = vperm.xlu0 %1431, %v1368
        %v1433 = vpop.permute.xlu0 %1432
        %1434 = vset.pattern.permute.xlu0 0
        %1435 = vperm.xlu0 %1434, %v1369
        %v1436 = vpop.permute.xlu0 %1435
        %1437 = vset.pattern.permute.xlu0 0
        %1438 = vperm.xlu0 %1437, %v1370
        %v1439 = vpop.permute.xlu0 %1438
        %1440 = vset.pattern.permute.xlu0 0
        %1441 = vperm.xlu0 %1440, %v1371
        %v1442 = vpop.permute.xlu0 %1441
        %vm1443 = vcmp.eq.s32.totalorder %v1377, %v1397
        %vm1444 = vcmp.eq.s32.totalorder %v1378, %v1397
        %vm1445 = vcmp.eq.s32.totalorder %v1377, %v1400
        %vm1446 = vcmp.eq.s32.totalorder %v1378, %v1400
        %vm1447 = vcmp.eq.s32.totalorder %v1377, %v1403
        %vm1448 = vcmp.eq.s32.totalorder %v1378, %v1403
        %vm1449 = vcmp.eq.s32.totalorder %v1377, %v1406
        %vm1450 = vcmp.eq.s32.totalorder %v1378, %v1406
        %vm1451 = vcmp.eq.s32.totalorder %v1377, %v1409
        %vm1452 = vcmp.eq.s32.totalorder %v1378, %v1409
        %vm1453 = vcmp.eq.s32.totalorder %v1377, %v1412
        %vm1454 = vcmp.eq.s32.totalorder %v1378, %v1412
        %vm1455 = vcmp.eq.s32.totalorder %v1377, %v1415
        %vm1456 = vcmp.eq.s32.totalorder %v1378, %v1415
        %vm1457 = vcmp.eq.s32.totalorder %v1377, %v1418
        %vm1458 = vcmp.eq.s32.totalorder %v1378, %v1418
        %vm1459 = vcmp.eq.s32.totalorder %v1377, %v1421
        %vm1460 = vcmp.eq.s32.totalorder %v1378, %v1421
        %vm1461 = vcmp.eq.s32.totalorder %v1377, %v1424
        %vm1462 = vcmp.eq.s32.totalorder %v1378, %v1424
        %vm1463 = vcmp.eq.s32.totalorder %v1377, %v1427
        %vm1464 = vcmp.eq.s32.totalorder %v1378, %v1427
        %vm1465 = vcmp.eq.s32.totalorder %v1377, %v1430
        %vm1466 = vcmp.eq.s32.totalorder %v1378, %v1430
        %vm1467 = vcmp.eq.s32.totalorder %v1377, %v1433
        %vm1468 = vcmp.eq.s32.totalorder %v1378, %v1433
        %vm1469 = vcmp.eq.s32.totalorder %v1377, %v1436
        %vm1470 = vcmp.eq.s32.totalorder %v1378, %v1436
        %vm1471 = vcmp.eq.s32.totalorder %v1377, %v1439
        %vm1472 = vcmp.eq.s32.totalorder %v1378, %v1439
        %vm1473 = vcmp.eq.s32.totalorder %v1377, %v1442
        %vm1474 = vcmp.eq.s32.totalorder %v1378, %v1442
        %v1475 = vsel %vm1443, %v835, 0.0
        %v1476 = vsel %vm1444, %v884, 0.0
        %v1477 = vsel %vm1445, %v837, 0.0
        %v1478 = vsel %vm1446, %v886, 0.0
        %v1479 = vsel %vm1447, %v840, 0.0
        %v1480 = vsel %vm1448, %v889, 0.0
        %v1481 = vsel %vm1449, %v842, 0.0
        %v1482 = vsel %vm1450, %v891, 0.0
        %v1483 = vsel %vm1451, %v845, 0.0
        %v1484 = vsel %vm1452, %v894, 0.0
        %v1485 = vsel %vm1453, %v847, 0.0
        %v1486 = vsel %vm1454, %v896, 0.0
        %v1487 = vsel %vm1455, %v850, 0.0
        %v1488 = vsel %vm1456, %v899, 0.0
        %v1489 = vsel %vm1457, %v852, 0.0
        %v1490 = vsel %vm1458, %v901, 0.0
        %v1491 = vsel %vm1459, %v855, 0.0
        %v1492 = vsel %vm1460, %v904, 0.0
        %v1493 = vsel %vm1461, %v857, 0.0
        %v1494 = vsel %vm1462, %v906, 0.0
        %v1495 = vsel %vm1463, %v860, 0.0
        %v1496 = vsel %vm1464, %v909, 0.0
        %v1497 = vsel %vm1465, %v862, 0.0
        %v1498 = vsel %vm1466, %v911, 0.0
        %v1499 = vsel %vm1467, %v865, 0.0
        %v1500 = vsel %vm1468, %v914, 0.0
        %v1501 = vsel %vm1469, %v867, 0.0
        %v1502 = vsel %vm1470, %v916, 0.0
        %v1503 = vsel %vm1471, %v870, 0.0
        %v1504 = vsel %vm1472, %v919, 0.0
        %v1505 = vsel %vm1473, %v872, 0.0
        %v1506 = vsel %vm1474, %v921, 0.0
        %v1507 = vadd.f32 %v1475, %v1476
        %1508 = vadd.xlane.f32.xlu0 %v1507
        %v1509 = vpop.xlane.xlu0 %1508
        %v1510 = vadd.f32 %v1477, %v1478
        %1511 = vadd.xlane.f32.xlu0 %v1510
        %v1512 = vpop.xlane.xlu0 %1511
        %v1513 = vadd.f32 %v1479, %v1480
        %1514 = vadd.xlane.f32.xlu0 %v1513
        %v1515 = vpop.xlane.xlu0 %1514
        %v1516 = vadd.f32 %v1481, %v1482
        %1517 = vadd.xlane.f32.xlu0 %v1516
        %v1518 = vpop.xlane.xlu0 %1517
        %v1519 = vadd.f32 %v1483, %v1484
        %1520 = vadd.xlane.f32.xlu0 %v1519
        %v1521 = vpop.xlane.xlu0 %1520
        %v1522 = vadd.f32 %v1485, %v1486
        %1523 = vadd.xlane.f32.xlu0 %v1522
        %v1524 = vpop.xlane.xlu0 %1523
        %v1525 = vadd.f32 %v1487, %v1488
        %1526 = vadd.xlane.f32.xlu0 %v1525
        %v1527 = vpop.xlane.xlu0 %1526
        %v1528 = vadd.f32 %v1489, %v1490
        %1529 = vadd.xlane.f32.xlu0 %v1528
        %v1530 = vpop.xlane.xlu0 %1529
        %v1531 = vadd.f32 %v1491, %v1492
        %1532 = vadd.xlane.f32.xlu0 %v1531
        %v1533 = vpop.xlane.xlu0 %1532
        %v1534 = vadd.f32 %v1493, %v1494
        %1535 = vadd.xlane.f32.xlu0 %v1534
        %v1536 = vpop.xlane.xlu0 %1535
        %v1537 = vadd.f32 %v1495, %v1496
        %1538 = vadd.xlane.f32.xlu0 %v1537
        %v1539 = vpop.xlane.xlu0 %1538
        %v1540 = vadd.f32 %v1497, %v1498
        %1541 = vadd.xlane.f32.xlu0 %v1540
        %v1542 = vpop.xlane.xlu0 %1541
        %v1543 = vadd.f32 %v1499, %v1500
        %1544 = vadd.xlane.f32.xlu0 %v1543
        %v1545 = vpop.xlane.xlu0 %1544
        %v1546 = vadd.f32 %v1501, %v1502
        %1547 = vadd.xlane.f32.xlu0 %v1546
        %v1548 = vpop.xlane.xlu0 %1547
        %v1549 = vadd.f32 %v1503, %v1504
        %1550 = vadd.xlane.f32.xlu0 %v1549
        %v1551 = vpop.xlane.xlu0 %1550
        %v1552 = vadd.f32 %v1505, %v1506
        %1553 = vadd.xlane.f32.xlu0 %v1552
        %v1554 = vpop.xlane.xlu0 %1553
        %v1555 = vadd.f32 %v1379, %v1509
        %v1556 = vadd.f32 %v1380, %v1512
        %v1557 = vadd.f32 %v1381, %v1515
        %v1558 = vadd.f32 %v1382, %v1518
        %v1559 = vadd.f32 %v1383, %v1521
        %v1560 = vadd.f32 %v1384, %v1524
        %v1561 = vadd.f32 %v1385, %v1527
        %v1562 = vadd.f32 %v1386, %v1530
        %v1563 = vadd.f32 %v1387, %v1533
        %v1564 = vadd.f32 %v1388, %v1536
        %v1565 = vadd.f32 %v1389, %v1539
        %v1566 = vadd.f32 %v1390, %v1542
        %v1567 = vadd.f32 %v1391, %v1545
        %v1568 = vadd.f32 %v1392, %v1548
        %v1569 = vadd.f32 %v1393, %v1551
        %v1570 = vadd.f32 %v1394, %v1554
        %1571 = vst.msk [vmem:[#allocation5] sm:$0xff] %vm1323, %v1555
        %1572 = vst.msk [vmem:[#allocation5 + $0x8] sm:$0xff] %vm1323, %v1556
        %1573 = vst.msk [vmem:[#allocation5 + $0x10] sm:$0xff] %vm1323, %v1557
        %1574 = vst.msk [vmem:[#allocation5 + $0x18] sm:$0xff] %vm1323, %v1558
        %1575 = vst.msk [vmem:[#allocation5 + $0x20] sm:$0xff] %vm1323, %v1559
        %1576 = vst.msk [vmem:[#allocation5 + $0x28] sm:$0xff] %vm1323, %v1560
        %1577 = vst.msk [vmem:[#allocation5 + $0x30] sm:$0xff] %vm1323, %v1561
        %1578 = vst.msk [vmem:[#allocation5 + $0x38] sm:$0xff] %vm1323, %v1562
        %1579 = vst.msk [vmem:[#allocation5 + $0x40] sm:$0xff] %vm1323, %v1563
        %1580 = vst.msk [vmem:[#allocation5 + $0x48] sm:$0xff] %vm1323, %v1564
        %1581 = vst.msk [vmem:[#allocation5 + $0x50] sm:$0xff] %vm1323, %v1565
        %1582 = vst.msk [vmem:[#allocation5 + $0x58] sm:$0xff] %vm1323, %v1566
        %1583 = vst.msk [vmem:[#allocation5 + $0x60] sm:$0xff] %vm1323, %v1567
        %1584 = vst.msk [vmem:[#allocation5 + $0x68] sm:$0xff] %vm1323, %v1568
        %1585 = vst.msk [vmem:[#allocation5 + $0x70] sm:$0xff] %vm1323, %v1569
        %1586 = vst.msk [vmem:[#allocation5 + $0x78] sm:$0xff] %vm1323, %v1570
        %p1587 = scmp.eq.s32.totalorder %s27, 1
        // Predicated region
        $region87: #{tpu_custom_call.1} parent=69 // pred_check
          %p1588 = pneg %p1587
        $region88: #{tpu_custom_call.1} parent=69 // pred_check_branch
          %1590 = sbr.rel (%p1588) target = $region90
        $region89: #{tpu_custom_call.1} parent=69 // pred_region
          %v1591 = vld [vmem:[#allocation3] sm:$0xff]
          %v1592 = vld [vmem:[#allocation3 + $0x8] sm:$0xff]
          %v1593 = vld [vmem:[#allocation3 + $0x10] sm:$0xff]
          %v1594 = vld [vmem:[#allocation3 + $0x18] sm:$0xff]
          %v1595 = vld [vmem:[#allocation3 + $0x20] sm:$0xff]
          %v1596 = vld [vmem:[#allocation3 + $0x28] sm:$0xff]
          %v1597 = vld [vmem:[#allocation3 + $0x30] sm:$0xff]
          %v1598 = vld [vmem:[#allocation3 + $0x38] sm:$0xff]
          %v1599 = vld [vmem:[#allocation3 + $0x40] sm:$0xff]
          %v1600 = vld [vmem:[#allocation3 + $0x48] sm:$0xff]
          %v1601 = vld [vmem:[#allocation3 + $0x50] sm:$0xff]
          %v1602 = vld [vmem:[#allocation3 + $0x58] sm:$0xff]
          %v1603 = vld [vmem:[#allocation3 + $0x60] sm:$0xff]
          %v1604 = vld [vmem:[#allocation3 + $0x68] sm:$0xff]
          %v1605 = vld [vmem:[#allocation3 + $0x70] sm:$0xff]
          %v1606 = vld [vmem:[#allocation3 + $0x78] sm:$0xff]
          %v1607 = vld [vmem:[#allocation4] sm:$0xff]
          %v1608 = vld [vmem:[#allocation4 + $0x8] sm:$0xff]
          %v1609 = vld [vmem:[#allocation4 + $0x10] sm:$0xff]
          %v1610 = vld [vmem:[#allocation4 + $0x18] sm:$0xff]
          %v1611 = vld [vmem:[#allocation4 + $0x20] sm:$0xff]
          %v1612 = vld [vmem:[#allocation4 + $0x28] sm:$0xff]
          %v1613 = vld [vmem:[#allocation4 + $0x30] sm:$0xff]
          %v1614 = vld [vmem:[#allocation4 + $0x38] sm:$0xff]
          %v1615 = vld [vmem:[#allocation4 + $0x40] sm:$0xff]
          %v1616 = vld [vmem:[#allocation4 + $0x48] sm:$0xff]
          %v1617 = vld [vmem:[#allocation4 + $0x50] sm:$0xff]
          %v1618 = vld [vmem:[#allocation4 + $0x58] sm:$0xff]
          %v1619 = vld [vmem:[#allocation4 + $0x60] sm:$0xff]
          %v1620 = vld [vmem:[#allocation4 + $0x68] sm:$0xff]
          %v1621 = vld [vmem:[#allocation4 + $0x70] sm:$0xff]
          %v1622 = vld [vmem:[#allocation4 + $0x78] sm:$0xff]
          %v1623 = vlog2.pop %v1607
          %v1624 = vmul.f32 %v1623, 0.6931472
          %v1625 = vlog2.pop %v1608
          %v1626 = vmul.f32 %v1625, 0.6931472
          %v1627 = vlog2.pop %v1609
          %v1628 = vmul.f32 %v1627, 0.6931472
          %v1629 = vlog2.pop %v1610
          %v1630 = vmul.f32 %v1629, 0.6931472
          %v1631 = vlog2.pop %v1611
          %v1632 = vmul.f32 %v1631, 0.6931472
          %v1633 = vlog2.pop %v1612
          %v1634 = vmul.f32 %v1633, 0.6931472
          %v1635 = vlog2.pop %v1613
          %v1636 = vmul.f32 %v1635, 0.6931472
          %v1637 = vlog2.pop %v1614
          %v1638 = vmul.f32 %v1637, 0.6931472
          %v1639 = vlog2.pop %v1615
          %v1640 = vmul.f32 %v1639, 0.6931472
          %v1641 = vlog2.pop %v1616
          %v1642 = vmul.f32 %v1641, 0.6931472
          %v1643 = vlog2.pop %v1617
          %v1644 = vmul.f32 %v1643, 0.6931472
          %v1645 = vlog2.pop %v1618
          %v1646 = vmul.f32 %v1645, 0.6931472
          %v1647 = vlog2.pop %v1619
          %v1648 = vmul.f32 %v1647, 0.6931472
          %v1649 = vlog2.pop %v1620
          %v1650 = vmul.f32 %v1649, 0.6931472
          %v1651 = vlog2.pop %v1621
          %v1652 = vmul.f32 %v1651, 0.6931472
          %v1653 = vlog2.pop %v1622
          %v1654 = vmul.f32 %v1653, 0.6931472
          %v1655 = vadd.f32 %v1591, %v1624
          %v1656 = vadd.f32 %v1592, %v1626
          %v1657 = vadd.f32 %v1593, %v1628
          %v1658 = vadd.f32 %v1594, %v1630
          %v1659 = vadd.f32 %v1595, %v1632
          %v1660 = vadd.f32 %v1596, %v1634
          %v1661 = vadd.f32 %v1597, %v1636
          %v1662 = vadd.f32 %v1598, %v1638
          %v1663 = vadd.f32 %v1599, %v1640
          %v1664 = vadd.f32 %v1600, %v1642
          %v1665 = vadd.f32 %v1601, %v1644
          %v1666 = vadd.f32 %v1602, %v1646
          %v1667 = vadd.f32 %v1603, %v1648
          %v1668 = vadd.f32 %v1604, %v1650
          %v1669 = vadd.f32 %v1605, %v1652
          %v1670 = vadd.f32 %v1606, %v1654
          %v1671 = vld [vmem:[#allocation5] sm:$0xff]
          %v1672 = vld [vmem:[#allocation5 + $0x8] sm:$0xff]
          %v1673 = vld [vmem:[#allocation5 + $0x10] sm:$0xff]
          %v1674 = vld [vmem:[#allocation5 + $0x18] sm:$0xff]
          %v1675 = vld [vmem:[#allocation5 + $0x20] sm:$0xff]
          %v1676 = vld [vmem:[#allocation5 + $0x28] sm:$0xff]
          %v1677 = vld [vmem:[#allocation5 + $0x30] sm:$0xff]
          %v1678 = vld [vmem:[#allocation5 + $0x38] sm:$0xff]
          %v1679 = vld [vmem:[#allocation5 + $0x40] sm:$0xff]
          %v1680 = vld [vmem:[#allocation5 + $0x48] sm:$0xff]
          %v1681 = vld [vmem:[#allocation5 + $0x50] sm:$0xff]
          %v1682 = vld [vmem:[#allocation5 + $0x58] sm:$0xff]
          %v1683 = vld [vmem:[#allocation5 + $0x60] sm:$0xff]
          %v1684 = vld [vmem:[#allocation5 + $0x68] sm:$0xff]
          %v1685 = vld [vmem:[#allocation5 + $0x70] sm:$0xff]
          %v1686 = vld [vmem:[#allocation5 + $0x78] sm:$0xff]
          %v1687 = vsub.f32 %v1655, %v1671
          %v1688 = vsub.f32 %v1656, %v1672
          %v1689 = vsub.f32 %v1657, %v1673
          %v1690 = vsub.f32 %v1658, %v1674
          %v1691 = vsub.f32 %v1659, %v1675
          %v1692 = vsub.f32 %v1660, %v1676
          %v1693 = vsub.f32 %v1661, %v1677
          %v1694 = vsub.f32 %v1662, %v1678
          %v1695 = vsub.f32 %v1663, %v1679
          %v1696 = vsub.f32 %v1664, %v1680
          %v1697 = vsub.f32 %v1665, %v1681
          %v1698 = vsub.f32 %v1666, %v1682
          %v1699 = vsub.f32 %v1667, %v1683
          %v1700 = vsub.f32 %v1668, %v1684
          %v1701 = vsub.f32 %v1669, %v1685
          %v1702 = vsub.f32 %v1670, %v1686
          %s1703 = smul.u32 %s26, 128
          %v1704 = vlaneseq
          %v1705 = vshrl.u32 %v1704, 7
          %v1706 = vadd.s32 %v1705, 8
          %v1707 = vadd.s32 %v1705, 16
          %v1708 = vadd.s32 %v1705, 24
          %v1709 = vadd.s32 %v1705, 32
          %v1710 = vadd.s32 %v1705, 40
          %v1711 = vadd.s32 %v1705, 48
          %v1712 = vadd.s32 %v1705, 56
          %v1713 = vadd.s32 %v1705, 64
          %v1714 = vadd.s32 %v1705, 72
          %v1715 = vadd.s32 %v1705, 80
          %v1716 = vadd.s32 %v1705, 88
          %v1717 = vadd.s32 %v1705, 96
          %v1718 = vadd.s32 %v1705, 104
          %v1719 = vadd.s32 %v1705, 112
          %v1720 = vadd.s32 %v1705, 120
          %v1721 = vstv %s1703
          %v1722 = vadd.s32 %v1721, %v1705
          %v1723 = vadd.s32 %v1721, %v1706
          %v1724 = vadd.s32 %v1721, %v1707
          %v1725 = vadd.s32 %v1721, %v1708
          %v1726 = vadd.s32 %v1721, %v1709
          %v1727 = vadd.s32 %v1721, %v1710
          %v1728 = vadd.s32 %v1721, %v1711
          %v1729 = vadd.s32 %v1721, %v1712
          %v1730 = vadd.s32 %v1721, %v1713
          %v1731 = vadd.s32 %v1721, %v1714
          %v1732 = vadd.s32 %v1721, %v1715
          %v1733 = vadd.s32 %v1721, %v1716
          %v1734 = vadd.s32 %v1721, %v1717
          %v1735 = vadd.s32 %v1721, %v1718
          %v1736 = vadd.s32 %v1721, %v1719
          %v1737 = vadd.s32 %v1721, %v1720
          %vm1738 = vcmp.ne.s32.totalorder %v1356, 4294967196
          %vm1739 = vcmp.ne.s32.totalorder %v1357, 4294967196
          %vm1740 = vcmp.ne.s32.totalorder %v1358, 4294967196
          %vm1741 = vcmp.ne.s32.totalorder %v1359, 4294967196
          %vm1742 = vcmp.ne.s32.totalorder %v1360, 4294967196
          %vm1743 = vcmp.ne.s32.totalorder %v1361, 4294967196
          %vm1744 = vcmp.ne.s32.totalorder %v1362, 4294967196
          %vm1745 = vcmp.ne.s32.totalorder %v1363, 4294967196
          %vm1746 = vcmp.ne.s32.totalorder %v1364, 4294967196
          %vm1747 = vcmp.ne.s32.totalorder %v1365, 4294967196
          %vm1748 = vcmp.ne.s32.totalorder %v1366, 4294967196
          %vm1749 = vcmp.ne.s32.totalorder %v1367, 4294967196
          %vm1750 = vcmp.ne.s32.totalorder %v1368, 4294967196
          %vm1751 = vcmp.ne.s32.totalorder %v1369, 4294967196
          %vm1752 = vcmp.ne.s32.totalorder %v1370, 4294967196
          %vm1753 = vcmp.ne.s32.totalorder %v1371, 4294967196
          %vm1754 = vcmp.lt.s32.totalorder %v1722, 256
          %vm1755 = vcmp.lt.s32.totalorder %v1723, 256
          %vm1756 = vcmp.lt.s32.totalorder %v1724, 256
          %vm1757 = vcmp.lt.s32.totalorder %v1725, 256
          %vm1758 = vcmp.lt.s32.totalorder %v1726, 256
          %vm1759 = vcmp.lt.s32.totalorder %v1727, 256
          %vm1760 = vcmp.lt.s32.totalorder %v1728, 256
          %vm1761 = vcmp.lt.s32.totalorder %v1729, 256
          %vm1762 = vcmp.lt.s32.totalorder %v1730, 256
          %vm1763 = vcmp.lt.s32.totalorder %v1731, 256
          %vm1764 = vcmp.lt.s32.totalorder %v1732, 256
          %vm1765 = vcmp.lt.s32.totalorder %v1733, 256
          %vm1766 = vcmp.lt.s32.totalorder %v1734, 256
          %vm1767 = vcmp.lt.s32.totalorder %v1735, 256
          %vm1768 = vcmp.lt.s32.totalorder %v1736, 256
          %vm1769 = vcmp.lt.s32.totalorder %v1737, 256
          %vm1770 = vmand %vm1738, %vm1754
          %vm1771 = vmand %vm1739, %vm1755
          %vm1772 = vmand %vm1740, %vm1756
          %vm1773 = vmand %vm1741, %vm1757
          %vm1774 = vmand %vm1742, %vm1758
          %vm1775 = vmand %vm1743, %vm1759
          %vm1776 = vmand %vm1744, %vm1760
          %vm1777 = vmand %vm1745, %vm1761
          %vm1778 = vmand %vm1746, %vm1762
          %vm1779 = vmand %vm1747, %vm1763
          %vm1780 = vmand %vm1748, %vm1764
          %vm1781 = vmand %vm1749, %vm1765
          %vm1782 = vmand %vm1750, %vm1766
          %vm1783 = vmand %vm1751, %vm1767
          %vm1784 = vmand %vm1752, %vm1768
          %vm1785 = vmand %vm1753, %vm1769
          %v1786 = vsel %vm1770, %v1687, 0.0
          %v1787 = vsel %vm1771, %v1688, 0.0
          %v1788 = vsel %vm1772, %v1689, 0.0
          %v1789 = vsel %vm1773, %v1690, 0.0
          %v1790 = vsel %vm1774, %v1691, 0.0
          %v1791 = vsel %vm1775, %v1692, 0.0
          %v1792 = vsel %vm1776, %v1693, 0.0
          %v1793 = vsel %vm1777, %v1694, 0.0
          %v1794 = vsel %vm1778, %v1695, 0.0
          %v1795 = vsel %vm1779, %v1696, 0.0
          %v1796 = vsel %vm1780, %v1697, 0.0
          %v1797 = vsel %vm1781, %v1698, 0.0
          %v1798 = vsel %vm1782, %v1699, 0.0
          %v1799 = vsel %vm1783, %v1700, 0.0
          %v1800 = vsel %vm1784, %v1701, 0.0
          %v1801 = vsel %vm1785, %v1702, 0.0
          %v1802 = vsel %vm1323, %v1786, 0.0
          %v1803 = vsel %vm1323, %v1787, 0.0
          %v1804 = vadd.f32 %v1802, %v1803
          %v1805 = vsel %vm1323, %v1788, 0.0
          %v1806 = vadd.f32 %v1804, %v1805
          %v1807 = vsel %vm1323, %v1789, 0.0
          %v1808 = vadd.f32 %v1806, %v1807
          %v1809 = vsel %vm1323, %v1790, 0.0
          %v1810 = vadd.f32 %v1808, %v1809
          %v1811 = vsel %vm1323, %v1791, 0.0
          %v1812 = vadd.f32 %v1810, %v1811
          %v1813 = vsel %vm1323, %v1792, 0.0
          %v1814 = vadd.f32 %v1812, %v1813
          %v1815 = vsel %vm1323, %v1793, 0.0
          %v1816 = vadd.f32 %v1814, %v1815
          %v1817 = vsel %vm1323, %v1794, 0.0
          %v1818 = vadd.f32 %v1816, %v1817
          %v1819 = vsel %vm1323, %v1795, 0.0
          %v1820 = vadd.f32 %v1818, %v1819
          %v1821 = vsel %vm1323, %v1796, 0.0
          %v1822 = vadd.f32 %v1820, %v1821
          %v1823 = vsel %vm1323, %v1797, 0.0
          %v1824 = vadd.f32 %v1822, %v1823
          %v1825 = vsel %vm1323, %v1798, 0.0
          %v1826 = vadd.f32 %v1824, %v1825
          %v1827 = vsel %vm1323, %v1799, 0.0
          %v1828 = vadd.f32 %v1826, %v1827
          %v1829 = vsel %vm1323, %v1800, 0.0
          %v1830 = vadd.f32 %v1828, %v1829
          %v1831 = vsel %vm1323, %v1801, 0.0
          %v1832 = vadd.f32 %v1830, %v1831
          %1833 = vadd.xlane.f32.xlu0 %v1832
          %v1834 = vpop.xlane.xlu0 %1833
          %v1835 = vrot.slane %v1834, 4
          %v1836 = vadd.f32 %v1834, %v1835
          %v1837 = vrot.slane %v1836, 2
          %v1838 = vadd.f32 %v1836, %v1837
          %v1839 = vrot.slane %v1838, 1
          %v1840 = vadd.f32 %v1838, %v1839
          %s1841 = vtos %v1840
          %v1842 = vstv %s1841
          %1843 = vst [vmem:[%s378] sm:$0xff] %v1842
        $region90: #{tpu_custom_call.1} parent=69 // pred_fallthru
          _
        %s1844 = sand.u32 %s141, 1
        %s1845 = scalar_lea.sflag [#allocation8], %s1844
        %s1846 = sand.u32 %s141, 1
        %s1847 = smul.addr %s1846, 8
        %s1848 = scalar_lea.vmem [#allocation12], %s1847
        // Predicated region
        $region91: #{tpu_custom_call.1} parent=69 // pred_check
          %p1849 = pneg %p151
        $region92: #{tpu_custom_call.1} parent=69 // pred_check_branch
          %1851 = sbr.rel (%p1849) target = $region94
        $region93: #{tpu_custom_call.1} parent=69 // pred_region
          %1853 = vsyncadd %s1845, 0
          %s1854 = smul.addr %s26, 8
          %s1855 = scalar_lea.hbm %s4, %s1854
          %s1857 = sshll.u32 %s1848, 4
          %s1858 = int_to_ptr.vmem [resolvable:$true] %s1857
          %s1859 = sshll.u32 %s1855, 4
          %s1860 = int_to_ptr.hbm [resolvable:$true] %s1859
          %1862 = dma.vmem_to_hbm [thread:$0]  %s1858, 128, %s1860, %s1845
        $region94: #{tpu_custom_call.1} parent=69 // pred_fallthru
          _
      $region70: #{tpu_custom_call.1} parent=5 // pred_fallthru
        _
      %p1863 = scmp.le.s32.totalorder 2, %s17
      // Predicated region
      $region95: #{tpu_custom_call.1} parent=5 // pred_check
        %p1864 = pneg %p1863
      $region96: #{tpu_custom_call.1} parent=5 // pred_check_branch
        %1866 = sbr.rel (%p1864) target = $region98
      $region97: #{tpu_custom_call.1} parent=5 // pred_region
        %s1867 = ssub.s32 %s17, 2
        // Predicated region
        $region99: #{tpu_custom_call.1} parent=97 // pred_check
          %p1868 = pneg %p157
        $region100: #{tpu_custom_call.1} parent=97 // pred_check_branch
          %1870 = sbr.rel (%p1868) target = $region102
        $region101: #{tpu_custom_call.1} parent=97 // pred_region
          %s1871 = sand.u32 %s142, 1
          %s1872 = scalar_lea.sflag [#allocation8], %s1871
          %s1873 = sand.u32 %s142, 1
          %s1874 = smul.addr %s1873, 8
          %s1875 = scalar_lea.vmem [#allocation12], %s1874
          %1877 = dma.done %s1872, 128
        $region102: #{tpu_custom_call.1} parent=97 // pred_fallthru
          _
      $region98: #{tpu_custom_call.1} parent=5 // pred_fallthru
        _
    $region6: #{tpu_custom_call.1} parent=1 // loop_footer
      %s21 = sadd.s32 1, %s17
    $region7: #{tpu_custom_call.1} parent=1 // loop_footer_branch
      %16 = sbr.rel target = $region3
    $region8: #{tpu_custom_call.1} parent=1 // loop_exit
      _
    %1878 = vsyncpa [#allocation7], 1
    %s1879 = scalar_lea.sflag [#allocation7], 1
    %1880 = vsyncpa %s1879, 1
    %1881 = vsyncpa [#allocation10], 1
    %1882 = vsyncpa [#allocation8], 1
    %s1883 = scalar_lea.sflag [#allocation8], 1
    %1884 = vsyncpa %s1883, 1

</llo_original>
